<compile_context>
chip_gen: v6e
topology: v6e:2x2x1
jax: 0.10.0
libtpu: 0.0.40
codegen_flags: <defaults>
</compile_context>

<pallas_src>
import functools

import jax
import jax.numpy as jnp
from jax.experimental import pallas as pl
from jax.experimental.pallas import tpu as pltpu  # noqa: F401  (imported per convention)

# ---- model hyper-parameters (small, consistent with the module defaults) ----
DIM = 32
HEADS = 4
DIM_HEAD = 8
INNER = HEADS * DIM_HEAD          # 32
FF_MULT = 4
HIDDEN = DIM * FF_MULT            # 128
LN_EPS = 1e-5
SQRT_2_OVER_PI = 0.7978845608028654


# ------------------------- in-kernel helpers --------------------------------
def _layernorm(x, g, b):
    mu = jnp.mean(x, axis=-1, keepdims=True)
    var = jnp.mean(jnp.square(x - mu), axis=-1, keepdims=True)
    return (x - mu) * jax.lax.rsqrt(var + LN_EPS) * g + b


def _gelu_tanh(x):
    # TODO(synk): PyTorch nn.GELU() defaults to exact-erf GELU; the tanh
    # approximation (|err| < 4e-3) maps to a single EUP tanh instead of a VALU
    # polynomial chain and is well inside the 1e-2 test tolerance.
    return 0.5 * x * (1.0 + jnp.tanh(SQRT_2_OVER_PI * (x + 0.044715 * x * x * x)))


# ------------------------------- kernel -------------------------------------
def _block_kernel(B, N, x_ref, w_qkv_ref, w_o_ref, w1_ref, w2_ref, vec_ref,
                  o_ref):
    x = x_ref[...]                                           # (B*N, D)

    # Packed gain/bias vectors: one (8,128) operand, static slices are free.
    ln1_g = vec_ref[0:1, :DIM]
    ln1_b = vec_ref[1:2, :DIM]
    b_o = vec_ref[2:3, :DIM]
    ln2_g = vec_ref[3:4, :DIM]
    ln2_b = vec_ref[4:5, :DIM]
    b1 = vec_ref[5:6, :HIDDEN]
    b2 = vec_ref[6:7, :DIM]

    # ---- PreNorm + multi-head attention + residual ----
    xn = _layernorm(x, ln1_g, ln1_b)                         # (B*N, D)
    # Single lane-dense qkv projection (scale folded into the q columns).
    qkv = jnp.dot(xn, w_qkv_ref[...],
                  preferred_element_type=jnp.float32)        # (B*N, 3*INNER)
    qkv = qkv.reshape(B, N, 3 * INNER)                       # sublane split only

    def split_heads(off):                                    # -> (B*H, N, DH)
        parts = [qkv[:, :, off + h * DIM_HEAD:off + (h + 1) * DIM_HEAD]
                 for h in range(HEADS)]                      # each (B, N, DH)
        return jnp.stack(parts, axis=1).reshape(B * HEADS, N, DIM_HEAD)

    q = split_heads(0)
    k = split_heads(INNER)
    v = split_heads(2 * INNER)

    sim = jnp.einsum('gid,gjd->gij', q, k,
                     preferred_element_type=jnp.float32)     # (B*H, N, N)
    m = jnp.max(sim, axis=-1, keepdims=True)
    e = jnp.exp(sim - m)
    denom = jnp.sum(e, axis=-1, keepdims=True)
    attn = e * pl.reciprocal(denom, approx=True)

    out_h = jnp.einsum('gij,gjd->gid', attn, v,
                       preferred_element_type=jnp.float32)   # (B*H, N, DH)

    # Merge heads back into a lane-dense (B*N, INNER) slab -> single out-proj.
    oh = out_h.reshape(B, HEADS, N, DIM_HEAD)
    merged = jnp.concatenate([oh[:, h] for h in range(HEADS)], axis=-1)
    attn_out = merged.reshape(B * N, INNER)                  # (B*N, INNER)

    x1 = jnp.dot(attn_out, w_o_ref[...],
                 preferred_element_type=jnp.float32) + b_o + x   # residual

    # ---- PreNorm + FeedForward + residual ----
    xn2 = _layernorm(x1, ln2_g, ln2_b)
    hid = jnp.dot(xn2, w1_ref[...], preferred_element_type=jnp.float32) + b1
    hid = _gelu_tanh(hid)
    ff = jnp.dot(hid, w2_ref[...], preferred_element_type=jnp.float32) + b2
    o_ref[...] = ff + x1

    # TODO(synk): causal=True path (causal attention mask + cumsum halting) not
    # needed for the default causal=False configuration implemented here.


# ------------------------------ wrapper --------------------------------------
def block_forward(x, p):
    B, N, D = x.shape
    assert D == DIM
    scale = DIM_HEAD ** -0.5

    # Fold 1/sqrt(d_head) into the q columns; keep the packed (D, 3*INNER) layout.
    w_qkv = jnp.concatenate(
        [p['w_qkv'][:, :INNER] * scale, p['w_qkv'][:, INNER:]], axis=1)

    # Pack all small gain/bias vectors into one zero-padded (8,128) operand.
    vecs = jnp.zeros((8, 128), jnp.float32)
    vecs = vecs.at[0, :DIM].set(p['ln1_g'].reshape(-1))
    vecs = vecs.at[1, :DIM].set(p['ln1_b'].reshape(-1))
    vecs = vecs.at[2, :DIM].set(p['b_o'].reshape(-1))
    vecs = vecs.at[3, :DIM].set(p['ln2_g'].reshape(-1))
    vecs = vecs.at[4, :DIM].set(p['ln2_b'].reshape(-1))
    vecs = vecs.at[5, :HIDDEN].set(p['b1'].reshape(-1))
    vecs = vecs.at[6, :DIM].set(p['b2'].reshape(-1))

    x_flat = x.reshape(B * N, D)   # 16 sublanes filled per vreg column block

    # Single grid-free pallas_call: whole batch in one kernel body, all operands
    # are full-array VMEM blocks (total footprint << scoped VMEM on v5e/v6e/v7x).
    x_out_flat = pl.pallas_call(
        functools.partial(_block_kernel, B, N),
        out_shape=jax.ShapeDtypeStruct((B * N, D), jnp.float32),
    )(x_flat, w_qkv, p['w_o'], p['w1'], p['w2'], vecs)

    x_out = x_out_flat.reshape(B, N, D)

    # Halting head (causal=False): mean over sequence + Linear(dim, 1), done in
    # plain JAX on the kernel output (avoids a masked (1,1,1) VMEM store).
    halt_in = jnp.mean(x_out, axis=1)                        # (B, D)
    halt = halt_in @ p['w_halt'] + p['b_halt']               # (B, 1)
    return x_out, halt[:, 0]


# ----------------------- deterministic parameter init ------------------------
def init_params(key):
    ks = list(jax.random.split(key, 10))

    def lin_w(k, fan_in, fan_out):
        bound = 1.0 / (fan_in ** 0.5)
        return jax.random.uniform(k, (fan_in, fan_out), jnp.float32, -bound, bound)

    def lin_b(k, fan_in, fan_out):
        bound = 1.0 / (fan_in ** 0.5)
        return jax.random.uniform(k, (1, fan_out), jnp.float32, -bound, bound)

    return {
        'ln1_g': jnp.ones((1, DIM), jnp.float32),
        'ln1_b': jnp.zeros((1, DIM), jnp.float32),
        'w_qkv': lin_w(ks[0], DIM, 3 * INNER),              # to_qkv (bias=False)
        'w_o':   lin_w(ks[1], INNER, DIM),
        'b_o':   lin_b(ks[2], INNER, DIM),
        'ln2_g': jnp.ones((1, DIM), jnp.float32),
        'ln2_b': jnp.zeros((1, DIM), jnp.float32),
        'w1':    lin_w(ks[3], DIM, HIDDEN),
        'b1':    lin_b(ks[4], DIM, HIDDEN),
        'w2':    lin_w(ks[5], HIDDEN, DIM),
        'b2':    lin_b(ks[6], HIDDEN, DIM),
        'w_halt': lin_w(ks[7], DIM, 1),
        'b_halt': lin_b(ks[8], DIM, 1),
    }


# ----------------------------- pure-JAX reference ----------------------------
def block_reference(x, p):
    prec = jax.lax.Precision.HIGHEST

    def ln(t, g, b):
        mu = t.mean(-1, keepdims=True)
        var = ((t - mu) ** 2).mean(-1, keepdims=True)
        return (t - mu) / jnp.sqrt(var + LN_EPS) * g + b

    B, N, D = x.shape
    xn = ln(x, p['ln1_g'], p['ln1_b'])
    qkv = jnp.einsum('bnd,de->bne', xn, p['w_qkv'], precision=prec)
    q, k, v = jnp.split(qkv, 3, axis=-1)

    def heads(t):
        return t.reshape(B, N, HEADS, DIM_HEAD).transpose(0, 2, 1, 3)

    q, k, v = map(heads, (q, k, v))
    sim = jnp.einsum('bhid,bhjd->bhij', q, k, precision=prec) * (DIM_HEAD ** -0.5)
    attn = jax.nn.softmax(sim, axis=-1)
    out = jnp.einsum('bhij,bhjd->bhid', attn, v, precision=prec)
    out = out.transpose(0, 2, 1, 3).reshape(B, N, INNER)
    x1 = jnp.einsum('bni,id->bnd', out, p['w_o'], precision=prec) + p['b_o'] + x

    xn2 = ln(x1, p['ln2_g'], p['ln2_b'])
    h = jnp.einsum('bnd,dh->bnh', xn2, p['w1'], precision=prec) + p['b1']
    h = jax.nn.gelu(h, approximate=False)
    x2 = jnp.einsum('bnh,hd->bnd', h, p['w2'], precision=prec) + p['b2'] + x1

    halt_in = x2.mean(axis=1)                                # (B, D)
    halt = halt_in @ p['w_halt'] + p['b_halt']               # (B, 1)
    return x2, halt[:, 0]


# ---------------------------------- main --------------------------------------
if __name__ == "__main__":
    key = jax.random.PRNGKey(0)
    kx, kp = jax.random.split(key)
    B, N = 2, 8
    x = jax.random.normal(kx, (B, N, DIM), jnp.float32)
    params = init_params(kp)

    x_out, halt = block_forward(x, params)
    jax.block_until_ready((x_out, halt))

    x_ref, halt_ref = block_reference(x, params)
    assert x_out.shape == (B, N, DIM) and halt.shape == (B,)
    assert jnp.allclose(x_out, x_ref, atol=1e-2, rtol=1e-2)
    assert jnp.allclose(halt, halt_ref, atol=1e-2, rtol=1e-2)
    print("KERNEL_OK")
</pallas_src>

<mosaic_0001>
module attributes {stable_mosaic.version = 11 : i64} {
  func.func @_block_kernel(%arg0: memref<16x32xf32, #tpu.memory_space<vmem>>, %arg1: memref<32x96xf32, #tpu.memory_space<vmem>>, %arg2: memref<32x32xf32, #tpu.memory_space<vmem>>, %arg3: memref<32x128xf32, #tpu.memory_space<vmem>>, %arg4: memref<128x32xf32, #tpu.memory_space<vmem>>, %arg5: memref<8x128xf32, #tpu.memory_space<vmem>>, %arg6: memref<16x32xf32, #tpu.memory_space<vmem>>) attributes {dimension_semantics = [], scalar_prefetch = 0 : i64, scratch_operands = 0 : i64, tpu.core_type = #tpu.core_type<tc>} {
    %c0 = arith.constant 0 : index
    %c0_0 = arith.constant 0 : index
    %0 = vector.load %arg0[%c0, %c0_0] : memref<16x32xf32, #tpu.memory_space<vmem>>, vector<16x32xf32>
    %c0_1 = arith.constant 0 : index
    %c0_2 = arith.constant 0 : index
    %1 = vector.load %arg5[%c0_1, %c0_2] : memref<8x128xf32, #tpu.memory_space<vmem>>, vector<1x32xf32>
    %c1 = arith.constant 1 : index
    %c0_3 = arith.constant 0 : index
    %2 = vector.load %arg5[%c1, %c0_3] : memref<8x128xf32, #tpu.memory_space<vmem>>, vector<1x32xf32>
    %c2 = arith.constant 2 : index
    %c0_4 = arith.constant 0 : index
    %3 = vector.load %arg5[%c2, %c0_4] : memref<8x128xf32, #tpu.memory_space<vmem>>, vector<1x32xf32>
    %c3 = arith.constant 3 : index
    %c0_5 = arith.constant 0 : index
    %4 = vector.load %arg5[%c3, %c0_5] : memref<8x128xf32, #tpu.memory_space<vmem>>, vector<1x32xf32>
    %c4 = arith.constant 4 : index
    %c0_6 = arith.constant 0 : index
    %5 = vector.load %arg5[%c4, %c0_6] : memref<8x128xf32, #tpu.memory_space<vmem>>, vector<1x32xf32>
    %c5 = arith.constant 5 : index
    %c0_7 = arith.constant 0 : index
    %6 = vector.load %arg5[%c5, %c0_7] : memref<8x128xf32, #tpu.memory_space<vmem>>, vector<1x128xf32>
    %c6 = arith.constant 6 : index
    %c0_8 = arith.constant 0 : index
    %7 = vector.load %arg5[%c6, %c0_8] : memref<8x128xf32, #tpu.memory_space<vmem>>, vector<1x32xf32>
    %cst = arith.constant dense<0.000000e+00> : vector<16xf32>
    %8 = vector.multi_reduction <add>, %0, %cst [1] : vector<16x32xf32> to vector<16xf32>
    %9 = vector.shape_cast %8 : vector<16xf32> to vector<16x1xf32>
    %cst_9 = arith.constant 3.200000e+01 : f32
    %10 = vector.broadcast %cst_9 : f32 to vector<16x1xf32>
    %11 = arith.divf %9, %10 : vector<16x1xf32>
    %12 = vector.broadcast %11 : vector<16x1xf32> to vector<16x32xf32>
    %13 = arith.subf %0, %12 : vector<16x32xf32>
    %14 = arith.mulf %13, %13 : vector<16x32xf32>
    %cst_10 = arith.constant dense<0.000000e+00> : vector<16xf32>
    %15 = vector.multi_reduction <add>, %14, %cst_10 [1] : vector<16x32xf32> to vector<16xf32>
    %16 = vector.shape_cast %15 : vector<16xf32> to vector<16x1xf32>
    %cst_11 = arith.constant 3.200000e+01 : f32
    %17 = vector.broadcast %cst_11 : f32 to vector<16x1xf32>
    %18 = arith.divf %16, %17 : vector<16x1xf32>
    %19 = vector.broadcast %11 : vector<16x1xf32> to vector<16x32xf32>
    %20 = arith.subf %0, %19 : vector<16x32xf32>
    %cst_12 = arith.constant 9.99999974E-6 : f32
    %21 = vector.broadcast %cst_12 : f32 to vector<16x1xf32>
    %22 = arith.addf %18, %21 : vector<16x1xf32>
    %23 = math.rsqrt %22 : vector<16x1xf32>
    %24 = vector.broadcast %23 : vector<16x1xf32> to vector<16x32xf32>
    %25 = arith.mulf %20, %24 : vector<16x32xf32>
    %26 = vector.broadcast %1 : vector<1x32xf32> to vector<16x32xf32>
    %27 = arith.mulf %25, %26 : vector<16x32xf32>
    %28 = vector.broadcast %2 : vector<1x32xf32> to vector<16x32xf32>
    %29 = arith.addf %27, %28 : vector<16x32xf32>
    %c0_13 = arith.constant 0 : index
    %c0_14 = arith.constant 0 : index
    %30 = vector.load %arg1[%c0_13, %c0_14] : memref<32x96xf32, #tpu.memory_space<vmem>>, vector<32x96xf32>
    %cst_15 = arith.constant dense<0.000000e+00> : vector<16x96xf32>
    %31 = tpu.matmul %29, %30, %cst_15 {dimension_numbers = #tpu.dot_dimension_numbers<[1], [0], [0], [1], [0, 0, 1, 1], [], []>} : vector<16x32xf32>, vector<32x96xf32>, vector<16x96xf32> -> vector<16x96xf32>
    %32 = vector.shape_cast %31 : vector<16x96xf32> to vector<2x8x96xf32>
    %33 = vector.extract_strided_slice %32 {offsets = [0, 0, 0], sizes = [2, 8, 8], strides = [1, 1, 1]} : vector<2x8x96xf32> to vector<2x8x8xf32>
    %34 = vector.extract_strided_slice %32 {offsets = [0, 0, 8], sizes = [2, 8, 8], strides = [1, 1, 1]} : vector<2x8x96xf32> to vector<2x8x8xf32>
    %35 = vector.extract_strided_slice %32 {offsets = [0, 0, 16], sizes = [2, 8, 8], strides = [1, 1, 1]} : vector<2x8x96xf32> to vector<2x8x8xf32>
    %36 = vector.extract_strided_slice %32 {offsets = [0, 0, 24], sizes = [2, 8, 8], strides = [1, 1, 1]} : vector<2x8x96xf32> to vector<2x8x8xf32>
    %37 = vector.shape_cast %33 : vector<2x8x8xf32> to vector<2x1x8x8xf32>
    %38 = vector.shape_cast %34 : vector<2x8x8xf32> to vector<2x1x8x8xf32>
    %39 = vector.shape_cast %35 : vector<2x8x8xf32> to vector<2x1x8x8xf32>
    %40 = vector.shape_cast %36 : vector<2x8x8xf32> to vector<2x1x8x8xf32>
    %41 = tpu.concatenate %37, %38, %39, %40 in 1 : vector<2x1x8x8xf32>, vector<2x1x8x8xf32>, vector<2x1x8x8xf32>, vector<2x1x8x8xf32> -> vector<2x4x8x8xf32>
    %42 = vector.shape_cast %41 : vector<2x4x8x8xf32> to vector<8x8x8xf32>
    %43 = vector.extract_strided_slice %32 {offsets = [0, 0, 32], sizes = [2, 8, 8], strides = [1, 1, 1]} : vector<2x8x96xf32> to vector<2x8x8xf32>
    %44 = vector.extract_strided_slice %32 {offsets = [0, 0, 40], sizes = [2, 8, 8], strides = [1, 1, 1]} : vector<2x8x96xf32> to vector<2x8x8xf32>
    %45 = vector.extract_strided_slice %32 {offsets = [0, 0, 48], sizes = [2, 8, 8], strides = [1, 1, 1]} : vector<2x8x96xf32> to vector<2x8x8xf32>
    %46 = vector.extract_strided_slice %32 {offsets = [0, 0, 56], sizes = [2, 8, 8], strides = [1, 1, 1]} : vector<2x8x96xf32> to vector<2x8x8xf32>
    %47 = vector.shape_cast %43 : vector<2x8x8xf32> to vector<2x1x8x8xf32>
    %48 = vector.shape_cast %44 : vector<2x8x8xf32> to vector<2x1x8x8xf32>
    %49 = vector.shape_cast %45 : vector<2x8x8xf32> to vector<2x1x8x8xf32>
    %50 = vector.shape_cast %46 : vector<2x8x8xf32> to vector<2x1x8x8xf32>
    %51 = tpu.concatenate %47, %48, %49, %50 in 1 : vector<2x1x8x8xf32>, vector<2x1x8x8xf32>, vector<2x1x8x8xf32>, vector<2x1x8x8xf32> -> vector<2x4x8x8xf32>
    %52 = vector.shape_cast %51 : vector<2x4x8x8xf32> to vector<8x8x8xf32>
    %53 = vector.extract_strided_slice %32 {offsets = [0, 0, 64], sizes = [2, 8, 8], strides = [1, 1, 1]} : vector<2x8x96xf32> to vector<2x8x8xf32>
    %54 = vector.extract_strided_slice %32 {offsets = [0, 0, 72], sizes = [2, 8, 8], strides = [1, 1, 1]} : vector<2x8x96xf32> to vector<2x8x8xf32>
    %55 = vector.extract_strided_slice %32 {offsets = [0, 0, 80], sizes = [2, 8, 8], strides = [1, 1, 1]} : vector<2x8x96xf32> to vector<2x8x8xf32>
    %56 = vector.extract_strided_slice %32 {offsets = [0, 0, 88], sizes = [2, 8, 8], strides = [1, 1, 1]} : vector<2x8x96xf32> to vector<2x8x8xf32>
    %57 = vector.shape_cast %53 : vector<2x8x8xf32> to vector<2x1x8x8xf32>
    %58 = vector.shape_cast %54 : vector<2x8x8xf32> to vector<2x1x8x8xf32>
    %59 = vector.shape_cast %55 : vector<2x8x8xf32> to vector<2x1x8x8xf32>
    %60 = vector.shape_cast %56 : vector<2x8x8xf32> to vector<2x1x8x8xf32>
    %61 = tpu.concatenate %57, %58, %59, %60 in 1 : vector<2x1x8x8xf32>, vector<2x1x8x8xf32>, vector<2x1x8x8xf32>, vector<2x1x8x8xf32> -> vector<2x4x8x8xf32>
    %62 = vector.shape_cast %61 : vector<2x4x8x8xf32> to vector<8x8x8xf32>
    "tpu.trace_start"() <{level = 10 : i32, message = "gid,gjd->gij"}> : () -> ()
    %cst_16 = arith.constant dense<0.000000e+00> : vector<8x8x8xf32>
    %63 = tpu.matmul %42, %52, %cst_16 {dimension_numbers = #tpu.dot_dimension_numbers<[2], [2], [1], [1], [0, 0, 0, 1, 1, 1], [0], [0]>} : vector<8x8x8xf32>, vector<8x8x8xf32>, vector<8x8x8xf32> -> vector<8x8x8xf32>
    "tpu.trace_stop"() : () -> ()
    %cst_17 = arith.constant dense<0xFF800000> : vector<8x8xf32>
    %64 = vector.multi_reduction <maximumf>, %63, %cst_17 [2] : vector<8x8x8xf32> to vector<8x8xf32>
    %65 = vector.shape_cast %64 : vector<8x8xf32> to vector<8x8x1xf32>
    %66 = vector.broadcast %65 : vector<8x8x1xf32> to vector<8x8x8xf32>
    %67 = arith.subf %63, %66 : vector<8x8x8xf32>
    %68 = math.exp %67 : vector<8x8x8xf32>
    %cst_18 = arith.constant dense<0.000000e+00> : vector<8x8xf32>
    %69 = vector.multi_reduction <add>, %68, %cst_18 [2] : vector<8x8x8xf32> to vector<8x8xf32>
    %70 = vector.shape_cast %69 : vector<8x8xf32> to vector<8x8x1xf32>
    %71 = tpu.reciprocal %70 {approx = true} : vector<8x8x1xf32> -> vector<8x8x1xf32>
    %72 = vector.broadcast %71 : vector<8x8x1xf32> to vector<8x8x8xf32>
    %73 = arith.mulf %68, %72 : vector<8x8x8xf32>
    "tpu.trace_start"() <{level = 10 : i32, message = "gij,gjd->gid"}> : () -> ()
    %cst_19 = arith.constant dense<0.000000e+00> : vector<8x8x8xf32>
    %74 = tpu.matmul %73, %62, %cst_19 {dimension_numbers = #tpu.dot_dimension_numbers<[2], [1], [1], [2], [0, 0, 0, 1, 1, 2], [0], [0]>} : vector<8x8x8xf32>, vector<8x8x8xf32>, vector<8x8x8xf32> -> vector<8x8x8xf32>
    "tpu.trace_stop"() : () -> ()
    %75 = vector.shape_cast %74 : vector<8x8x8xf32> to vector<2x4x8x8xf32>
    %76 = vector.extract_strided_slice %75 {offsets = [0, 0, 0, 0], sizes = [2, 1, 8, 8], strides = [1, 1, 1, 1]} : vector<2x4x8x8xf32> to vector<2x1x8x8xf32>
    %77 = vector.shape_cast %76 : vector<2x1x8x8xf32> to vector<2x8x8xf32>
    %78 = vector.extract_strided_slice %75 {offsets = [0, 1, 0, 0], sizes = [2, 1, 8, 8], strides = [1, 1, 1, 1]} : vector<2x4x8x8xf32> to vector<2x1x8x8xf32>
    %79 = vector.shape_cast %78 : vector<2x1x8x8xf32> to vector<2x8x8xf32>
    %80 = vector.extract_strided_slice %75 {offsets = [0, 2, 0, 0], sizes = [2, 1, 8, 8], strides = [1, 1, 1, 1]} : vector<2x4x8x8xf32> to vector<2x1x8x8xf32>
    %81 = vector.shape_cast %80 : vector<2x1x8x8xf32> to vector<2x8x8xf32>
    %82 = vector.extract_strided_slice %75 {offsets = [0, 3, 0, 0], sizes = [2, 1, 8, 8], strides = [1, 1, 1, 1]} : vector<2x4x8x8xf32> to vector<2x1x8x8xf32>
    %83 = vector.shape_cast %82 : vector<2x1x8x8xf32> to vector<2x8x8xf32>
    %84 = tpu.concatenate %77, %79, %81, %83 in 2 : vector<2x8x8xf32>, vector<2x8x8xf32>, vector<2x8x8xf32>, vector<2x8x8xf32> -> vector<2x8x32xf32>
    %85 = vector.shape_cast %84 : vector<2x8x32xf32> to vector<16x32xf32>
    %c0_20 = arith.constant 0 : index
    %c0_21 = arith.constant 0 : index
    %86 = vector.load %arg2[%c0_20, %c0_21] : memref<32x32xf32, #tpu.memory_space<vmem>>, vector<32x32xf32>
    %cst_22 = arith.constant dense<0.000000e+00> : vector<16x32xf32>
    %87 = tpu.matmul %85, %86, %cst_22 {dimension_numbers = #tpu.dot_dimension_numbers<[1], [0], [0], [1], [0, 0, 1, 1], [], []>} : vector<16x32xf32>, vector<32x32xf32>, vector<16x32xf32> -> vector<16x32xf32>
    %88 = vector.broadcast %3 : vector<1x32xf32> to vector<16x32xf32>
    %89 = arith.addf %87, %88 : vector<16x32xf32>
    %90 = arith.addf %89, %0 : vector<16x32xf32>
    %cst_23 = arith.constant dense<0.000000e+00> : vector<16xf32>
    %91 = vector.multi_reduction <add>, %90, %cst_23 [1] : vector<16x32xf32> to vector<16xf32>
    %92 = vector.shape_cast %91 : vector<16xf32> to vector<16x1xf32>
    %cst_24 = arith.constant 3.200000e+01 : f32
    %93 = vector.broadcast %cst_24 : f32 to vector<16x1xf32>
    %94 = arith.divf %92, %93 : vector<16x1xf32>
    %95 = vector.broadcast %94 : vector<16x1xf32> to vector<16x32xf32>
    %96 = arith.subf %90, %95 : vector<16x32xf32>
    %97 = arith.mulf %96, %96 : vector<16x32xf32>
    %cst_25 = arith.constant dense<0.000000e+00> : vector<16xf32>
    %98 = vector.multi_reduction <add>, %97, %cst_25 [1] : vector<16x32xf32> to vector<16xf32>
    %99 = vector.shape_cast %98 : vector<16xf32> to vector<16x1xf32>
    %cst_26 = arith.constant 3.200000e+01 : f32
    %100 = vector.broadcast %cst_26 : f32 to vector<16x1xf32>
    %101 = arith.divf %99, %100 : vector<16x1xf32>
    %102 = vector.broadcast %94 : vector<16x1xf32> to vector<16x32xf32>
    %103 = arith.subf %90, %102 : vector<16x32xf32>
    %cst_27 = arith.constant 9.99999974E-6 : f32
    %104 = vector.broadcast %cst_27 : f32 to vector<16x1xf32>
    %105 = arith.addf %101, %104 : vector<16x1xf32>
    %106 = math.rsqrt %105 : vector<16x1xf32>
    %107 = vector.broadcast %106 : vector<16x1xf32> to vector<16x32xf32>
    %108 = arith.mulf %103, %107 : vector<16x32xf32>
    %109 = vector.broadcast %4 : vector<1x32xf32> to vector<16x32xf32>
    %110 = arith.mulf %108, %109 : vector<16x32xf32>
    %111 = vector.broadcast %5 : vector<1x32xf32> to vector<16x32xf32>
    %112 = arith.addf %110, %111 : vector<16x32xf32>
    %c0_28 = arith.constant 0 : index
    %c0_29 = arith.constant 0 : index
    %113 = vector.load %arg3[%c0_28, %c0_29] : memref<32x128xf32, #tpu.memory_space<vmem>>, vector<32x128xf32>
    %cst_30 = arith.constant dense<0.000000e+00> : vector<16x128xf32>
    %114 = tpu.matmul %112, %113, %cst_30 {dimension_numbers = #tpu.dot_dimension_numbers<[1], [0], [0], [1], [0, 0, 1, 1], [], []>} : vector<16x32xf32>, vector<32x128xf32>, vector<16x128xf32> -> vector<16x128xf32>
    %115 = vector.broadcast %6 : vector<1x128xf32> to vector<16x128xf32>
    %116 = arith.addf %114, %115 : vector<16x128xf32>
    %cst_31 = arith.constant 5.000000e-01 : f32
    %117 = vector.broadcast %cst_31 : f32 to vector<16x128xf32>
    %118 = arith.mulf %117, %116 : vector<16x128xf32>
    %cst_32 = arith.constant 4.471500e-02 : f32
    %119 = vector.broadcast %cst_32 : f32 to vector<16x128xf32>
    %120 = arith.mulf %119, %116 : vector<16x128xf32>
    %121 = arith.mulf %120, %116 : vector<16x128xf32>
    %122 = arith.mulf %121, %116 : vector<16x128xf32>
    %123 = arith.addf %116, %122 : vector<16x128xf32>
    %cst_33 = arith.constant 0.797884583 : f32
    %124 = vector.broadcast %cst_33 : f32 to vector<16x128xf32>
    %125 = arith.mulf %124, %123 : vector<16x128xf32>
    %126 = math.tanh %125 : vector<16x128xf32>
    %cst_34 = arith.constant 1.000000e+00 : f32
    %127 = vector.broadcast %cst_34 : f32 to vector<16x128xf32>
    %128 = arith.addf %127, %126 : vector<16x128xf32>
    %129 = arith.mulf %118, %128 : vector<16x128xf32>
    %c0_35 = arith.constant 0 : index
    %c0_36 = arith.constant 0 : index
    %130 = vector.load %arg4[%c0_35, %c0_36] : memref<128x32xf32, #tpu.memory_space<vmem>>, vector<128x32xf32>
    %cst_37 = arith.constant dense<0.000000e+00> : vector<16x32xf32>
    %131 = tpu.matmul %129, %130, %cst_37 {dimension_numbers = #tpu.dot_dimension_numbers<[1], [0], [0], [1], [0, 0, 1, 1], [], []>} : vector<16x128xf32>, vector<128x32xf32>, vector<16x32xf32> -> vector<16x32xf32>
    %132 = vector.broadcast %7 : vector<1x32xf32> to vector<16x32xf32>
    %133 = arith.addf %131, %132 : vector<16x32xf32>
    %134 = arith.addf %133, %90 : vector<16x32xf32>
    %c0_38 = arith.constant 0 : index
    %c0_39 = arith.constant 0 : index
    %135 = vector.load %arg6[%c0_38, %c0_39] : memref<16x32xf32, #tpu.memory_space<vmem>>, vector<16x32xf32>
    tpu.vector_store %arg6[%c0_38, %c0_39], %134 {strides = array<i32>} : memref<16x32xf32, #tpu.memory_space<vmem>>, vector<16x32xf32>,
    return
  }
}

</mosaic_0001>

<llo_original>
// kernel: tpu_custom_call.1
$region0: #{tpu_custom_call.1}
  #allocation0 [shape = 'u32[]', space=smem, size = 0x4, offset = 0x4, fixed_abs, tag = 'smem constant byte address 0x4 - core index']
  #allocation1 [shape = 'u32[144,128]{1,0:T(1,128)}', space=vmem, size = 0x12000, scoped, tag = 'internal scratch']
  %s0 = inlined_call_operand.vmem [shape: f32[16,32], index: 0, kind: input, shape index: {}]
  %s1 = inlined_call_operand.vmem [shape: f32[32,96], index: 1, kind: input, shape index: {}]
  %s2 = inlined_call_operand.vmem [shape: f32[32,32], index: 2, kind: input, shape index: {}]
  %s3 = inlined_call_operand.vmem [shape: f32[32,128], index: 3, kind: input, shape index: {}]
  %s4 = inlined_call_operand.vmem [shape: f32[128,32], index: 4, kind: input, shape index: {}]
  %s5 = inlined_call_operand.vmem [shape: f32[8,128], index: 5, kind: input, shape index: {}]
  %s6 = inlined_call_operand.hbm [shape: f32[16,32], index: 6, kind: output, shape index: {}]
  %s7 = sld [smem:[#allocation0]]
  $region34: #{tpu_custom_call.1} parent=0
    _
  %s9 = ssub.s32 1, %s7
  %s10 = scalar_select 0, %s9, %s7
  $region1: #{tpu_custom_call.1} parent=0
    #allocation2 [shape = 'u8[8192]{0}', space=vmem, size = 0x2000, scoped, tag = 'output window, operand 0, single buffered']
    #allocation3 [shape = 's32[1]{0}', space=sflag, size = 0x4, scoped, tag = 'scoped memory for tpu_custom_call.1']
    %11 = vsyncpa [#allocation3], 0
    // Predicated region
    $region2: #{tpu_custom_call.1} parent=1 // pred_check
      _
    $region3: #{tpu_custom_call.1} parent=1 // pred_check_branch
      %13 = sbr.rel (0) target = $region5
    $region4: #{tpu_custom_call.1} parent=1 // pred_region
      _
    $region5: #{tpu_custom_call.1} parent=1 // pred_fallthru
      _
    // Predicated region
    $region6: #{tpu_custom_call.1} parent=1 // pred_check
      _
    $region7: #{tpu_custom_call.1} parent=1 // pred_check_branch
      %15 = sbr.rel (0) target = $region9
    $region8: #{tpu_custom_call.1} parent=1 // pred_region
      _
    $region9: #{tpu_custom_call.1} parent=1 // pred_fallthru
      _
    // Predicated region
    $region10: #{tpu_custom_call.1} parent=1 // pred_check
      _
    $region11: #{tpu_custom_call.1} parent=1 // pred_check_branch
      %17 = sbr.rel (0) target = $region13
    $region12: #{tpu_custom_call.1} parent=1 // pred_region
      _
    $region13: #{tpu_custom_call.1} parent=1 // pred_fallthru
      _
    // Predicated region
    $region14: #{tpu_custom_call.1} parent=1 // pred_check
      _
    $region15: #{tpu_custom_call.1} parent=1 // pred_check_branch
      %19 = sbr.rel (0) target = $region17
    $region16: #{tpu_custom_call.1} parent=1 // pred_region
      _
    $region17: #{tpu_custom_call.1} parent=1 // pred_fallthru
      _
    // Predicated region
    $region18: #{tpu_custom_call.1} parent=1 // pred_check
      _
    $region19: #{tpu_custom_call.1} parent=1 // pred_check_branch
      %21 = sbr.rel (0) target = $region21
    $region20: #{tpu_custom_call.1} parent=1 // pred_region
      _
    $region21: #{tpu_custom_call.1} parent=1 // pred_fallthru
      _
    // Predicated region
    $region22: #{tpu_custom_call.1} parent=1 // pred_check
      _
    $region23: #{tpu_custom_call.1} parent=1 // pred_check_branch
      %23 = sbr.rel (0) target = $region25
    $region24: #{tpu_custom_call.1} parent=1 // pred_region
      _
    $region25: #{tpu_custom_call.1} parent=1 // pred_fallthru
      _
    %v24 = vld [vmem:[%s0] sm:$0xff]
    %v25 = vld [vmem:[%s0 + $0x8] sm:$0xff]
    %v26 = vld [vmem:[%s5] sm:$0x1]
    %v27 = vld [vmem:[%s5 + $0x1] sm:$0x1]
    %v28 = vld [vmem:[%s5 + $0x2] sm:$0x1]
    %v29 = vld [vmem:[%s5 + $0x3] sm:$0x1]
    %v30 = vld [vmem:[%s5 + $0x4] sm:$0x1]
    %v31 = vld [vmem:[%s5 + $0x5] sm:$0x1]
    %v32 = vld [vmem:[%s5 + $0x6] sm:$0x1]
    %vm33 = vcmask 261120
    %v34 = vsel %vm33, %v24, 0.0
    %35 = vadd.xlane.f32.xlu0 %v34
    %v36 = vpop.xlane.xlu0 %35
    %v37 = vsel %vm33, %v25, 0.0
    %38 = vadd.xlane.f32.xlu0 %v37
    %v39 = vpop.xlane.xlu0 %38
    %v40 = vrcp.pop 32.0
    %v41 = vmul.f32 %v36, %v40
    %v42 = vmul.f32 %v39, %v40
    %v43 = vsub.f32 %v24, %v41
    %v44 = vsub.f32 %v25, %v42
    %v45 = vmul.f32 %v43, %v43
    %v46 = vmul.f32 %v44, %v44
    %v47 = vsel %vm33, %v45, 0.0
    %48 = vadd.xlane.f32.xlu0 %v47
    %v49 = vpop.xlane.xlu0 %48
    %v50 = vsel %vm33, %v46, 0.0
    %51 = vadd.xlane.f32.xlu0 %v50
    %v52 = vpop.xlane.xlu0 %51
    %v53 = vmul.f32 %v49, %v40
    %v54 = vmul.f32 %v52, %v40
    %v55 = vadd.f32 %v53, 1e-05
    %v56 = vadd.f32 %v54, 1e-05
    %v57 = vrsqrt.pop %v55
    %v58 = vrsqrt.pop %v56
    %v59 = vmul.f32 %v43, %v57
    %v60 = vmul.f32 %v44, %v58
    %v61 = vlaneseq
    %v62 = vshrl.u32 %v61, 7
    %v63 = vsub.s32 0, %v62
    %v64 = vrot.slane %v26, %v63
    %v65 = vmul.f32 %v59, %v64
    %v66 = vmul.f32 %v60, %v64
    %v67 = vlaneseq
    %v68 = vshrl.u32 %v67, 7
    %v69 = vsub.s32 0, %v68
    %v70 = vrot.slane %v27, %v69
    %v71 = vadd.f32 %v65, %v70
    %v72 = vadd.f32 %v66, %v70
    %v73 = vld [vmem:[%s1] sm:$0xff]
    %v74 = vld [vmem:[%s1 + $0x8] sm:$0xff]
    %v75 = vld [vmem:[%s1 + $0x10] sm:$0xff]
    %v76 = vld [vmem:[%s1 + $0x18] sm:$0xff]
    %v78 = vsel %vm33, %v71, 0
    %v81 = vsel %vm33, %v72, 0
    %83 = vmatprep.subr.mxu0 0.0
    %84 = vmatpush1.msra.mxu0 0.0
    %85 = vmatprep.subr.mxu0 0.0
    %86 = vmatpush1.msra.mxu0 0.0
    %87 = vmatprep.subr.mxu0 0.0
    %88 = vmatpush1.msra.mxu0 0.0
    %89 = vmatprep.subr.mxu0 0.0
    %90 = vmatpush1.msra.mxu0 0.0
    %91 = vmatprep.subr.mxu0 0.0
    %92 = vmatpush1.msra.mxu0 0.0
    %93 = vmatprep.subr.mxu0 0.0
    %94 = vmatpush1.msra.mxu0 0.0
    %95 = vmatprep.subr.mxu0 0.0
    %96 = vmatpush1.msra.mxu0 0.0
    %97 = vmatprep.subr.mxu0 0.0
    %98 = vmatpush1.msra.mxu0 0.0
    %99 = vmatprep.subr.mxu0 0.0
    %100 = vmatpush1.msra.mxu0 0.0
    %101 = vmatprep.subr.mxu0 0.0
    %102 = vmatpush1.msra.mxu0 0.0
    %103 = vmatprep.subr.mxu0 0.0
    %104 = vmatpush1.msra.mxu0 0.0
    %105 = vmatprep.subr.mxu0 0.0
    %106 = vmatpush1.msra.mxu0 0.0
    %107 = vmatprep.subr.mxu0 0.0
    %108 = vmatpush1.msra.mxu0 %v76
    %109 = vmatprep.subr.mxu0 0.0
    %110 = vmatpush1.msra.mxu0 %v75
    %111 = vmatprep.subr.mxu0 0.0
    %112 = vmatpush1.msra.mxu0 %v74
    %113 = vmatprep.subr.mxu0 0.0
    %114 = vmatpush1.msra.mxu0 %v73
    %115 = vmatprep.subr.mxu0 0.0
    %116 = vmatpush2.msra.mxu0 0.0
    %117 = vmatprep.subr.mxu0 0.0
    %118 = vmatpush2.msra.mxu0 0.0
    %119 = vmatprep.subr.mxu0 0.0
    %120 = vmatpush2.msra.mxu0 0.0
    %121 = vmatprep.subr.mxu0 0.0
    %122 = vmatpush2.msra.mxu0 0.0
    %123 = vmatprep.subr.mxu0 0.0
    %124 = vmatpush2.msra.mxu0 0.0
    %125 = vmatprep.subr.mxu0 0.0
    %126 = vmatpush2.msra.mxu0 0.0
    %127 = vmatprep.subr.mxu0 0.0
    %128 = vmatpush2.msra.mxu0 0.0
    %129 = vmatprep.subr.mxu0 0.0
    %130 = vmatpush2.msra.mxu0 0.0
    %131 = vmatprep.subr.mxu0 0.0
    %132 = vmatpush2.msra.mxu0 0.0
    %133 = vmatprep.subr.mxu0 0.0
    %134 = vmatpush2.msra.mxu0 0.0
    %135 = vmatprep.subr.mxu0 0.0
    %136 = vmatpush2.msra.mxu0 0.0
    %137 = vmatprep.subr.mxu0 0.0
    %138 = vmatpush2.msra.mxu0 0.0
    %139 = vmatprep.subr.mxu0 0.0
    %140 = vmatpush2.msra.mxu0 0.0
    %141 = vmatprep.subr.mxu0 0.0
    %142 = vmatpush2.msra.mxu0 0.0
    %143 = vmatprep.subr.mxu0 0.0
    %144 = vmatpush2.msra.mxu0 0.0
    %145 = vmatprep.subr.mxu0 0.0
    %146 = vmatpush2.msra.mxu0 0.0
    %147 = vmatprep.mubr.f32.mxu0 0.0
    %148 = vmatmul.mubr.f32.gmra.mxu0 %v78
    %v149 = vpop.f32.mrf.mxu0
    %v150 = vadd.f32 0.0, %v149
    %v151 = vpop.f32.mrf.mxu0
    %152 = vmatprep.mubr.f32.mxu0 0.0
    %153 = vmatmul.mubr.f32.gmra.mxu0 %v81
    %v154 = vpop.f32.mrf.mxu0
    %v155 = vadd.f32 0.0, %v154
    %v156 = vpop.f32.mrf.mxu0
    %157 = vdwg.mxu0
    %160 = vrot.lane.b32.xlu0 %v150, 120
    %v161 = vpop.permute.xlu0 %160
    %162 = vrot.lane.b32.xlu0 %v155, 120
    %v163 = vpop.permute.xlu0 %162
    %164 = vrot.lane.b32.xlu0 %v150, 112
    %v165 = vpop.permute.xlu0 %164
    %166 = vrot.lane.b32.xlu0 %v155, 112
    %v167 = vpop.permute.xlu0 %166
    %168 = vrot.lane.b32.xlu0 %v150, 104
    %v169 = vpop.permute.xlu0 %168
    %170 = vrot.lane.b32.xlu0 %v155, 104
    %v171 = vpop.permute.xlu0 %170
    %172 = vrot.lane.b32.xlu0 %v150, 96
    %v173 = vpop.permute.xlu0 %172
    %vm174 = vcmask 64512
    %v175 = vsel %vm174, %v150, 0
    %v177 = vsel %vm174, %v173, 0
    %179 = vmatprep.subr.mxu0 0.0
    %180 = vmatpush1.xpose.msra.mxu0 0.0
    %181 = vmatprep.subr.mxu0 0.0
    %182 = vmatpush1.xpose.msra.mxu0 0.0
    %183 = vmatprep.subr.mxu0 0.0
    %184 = vmatpush1.xpose.msra.mxu0 0.0
    %185 = vmatprep.subr.mxu0 0.0
    %186 = vmatpush1.xpose.msra.mxu0 0.0
    %187 = vmatprep.subr.mxu0 0.0
    %188 = vmatpush1.xpose.msra.mxu0 0.0
    %189 = vmatprep.subr.mxu0 0.0
    %190 = vmatpush1.xpose.msra.mxu0 0.0
    %191 = vmatprep.subr.mxu0 0.0
    %192 = vmatpush1.xpose.msra.mxu0 0.0
    %193 = vmatprep.subr.mxu0 0.0
    %194 = vmatpush1.xpose.msra.mxu0 0.0
    %195 = vmatprep.subr.mxu0 0.0
    %196 = vmatpush1.xpose.msra.mxu0 0.0
    %197 = vmatprep.subr.mxu0 0.0
    %198 = vmatpush1.xpose.msra.mxu0 0.0
    %199 = vmatprep.subr.mxu0 0.0
    %200 = vmatpush1.xpose.msra.mxu0 0.0
    %201 = vmatprep.subr.mxu0 0.0
    %202 = vmatpush1.xpose.msra.mxu0 0.0
    %203 = vmatprep.subr.mxu0 0.0
    %204 = vmatpush1.xpose.msra.mxu0 0.0
    %205 = vmatprep.subr.mxu0 0.0
    %206 = vmatpush1.xpose.msra.mxu0 0.0
    %207 = vmatprep.subr.mxu0 0.0
    %208 = vmatpush1.xpose.msra.mxu0 0.0
    %209 = vmatprep.subr.mxu0 0.0
    %210 = vmatpush1.xpose.msra.mxu0 %v177
    %211 = vmatprep.subr.mxu0 0.0
    %212 = vmatpush2.xpose.msra.mxu0 0.0
    %213 = vmatprep.subr.mxu0 0.0
    %214 = vmatpush2.xpose.msra.mxu0 0.0
    %215 = vmatprep.subr.mxu0 0.0
    %216 = vmatpush2.xpose.msra.mxu0 0.0
    %217 = vmatprep.subr.mxu0 0.0
    %218 = vmatpush2.xpose.msra.mxu0 0.0
    %219 = vmatprep.subr.mxu0 0.0
    %220 = vmatpush2.xpose.msra.mxu0 0.0
    %221 = vmatprep.subr.mxu0 0.0
    %222 = vmatpush2.xpose.msra.mxu0 0.0
    %223 = vmatprep.subr.mxu0 0.0
    %224 = vmatpush2.xpose.msra.mxu0 0.0
    %225 = vmatprep.subr.mxu0 0.0
    %226 = vmatpush2.xpose.msra.mxu0 0.0
    %227 = vmatprep.subr.mxu0 0.0
    %228 = vmatpush2.xpose.msra.mxu0 0.0
    %229 = vmatprep.subr.mxu0 0.0
    %230 = vmatpush2.xpose.msra.mxu0 0.0
    %231 = vmatprep.subr.mxu0 0.0
    %232 = vmatpush2.xpose.msra.mxu0 0.0
    %233 = vmatprep.subr.mxu0 0.0
    %234 = vmatpush2.xpose.msra.mxu0 0.0
    %235 = vmatprep.subr.mxu0 0.0
    %236 = vmatpush2.xpose.msra.mxu0 0.0
    %237 = vmatprep.subr.mxu0 0.0
    %238 = vmatpush2.xpose.msra.mxu0 0.0
    %239 = vmatprep.subr.mxu0 0.0
    %240 = vmatpush2.xpose.msra.mxu0 0.0
    %241 = vmatprep.subr.mxu0 0.0
    %242 = vmatpush2.xpose.msra.mxu0 0.0
    %243 = vmatprep.mubr.f32.mxu0 0.0
    %244 = vmatmul.mubr.f32.gmra.mxu0 %v175
    %v245 = vpop.f32.mrf.mxu0
    %v246 = vadd.f32 0.0, %v245
    %v247 = vpop.f32.mrf.mxu0
    %248 = vdwg.mxu0
    %249 = vrot.lane.b32.xlu0 %v161, 96
    %v250 = vpop.permute.xlu0 %249
    %v251 = vsel %vm174, %v161, 0
    %v253 = vsel %vm174, %v250, 0
    %255 = vmatprep.subr.mxu0 0.0
    %256 = vmatpush1.xpose.msra.mxu0 0.0
    %257 = vmatprep.subr.mxu0 0.0
    %258 = vmatpush1.xpose.msra.mxu0 0.0
    %259 = vmatprep.subr.mxu0 0.0
    %260 = vmatpush1.xpose.msra.mxu0 0.0
    %261 = vmatprep.subr.mxu0 0.0
    %262 = vmatpush1.xpose.msra.mxu0 0.0
    %263 = vmatprep.subr.mxu0 0.0
    %264 = vmatpush1.xpose.msra.mxu0 0.0
    %265 = vmatprep.subr.mxu0 0.0
    %266 = vmatpush1.xpose.msra.mxu0 0.0
    %267 = vmatprep.subr.mxu0 0.0
    %268 = vmatpush1.xpose.msra.mxu0 0.0
    %269 = vmatprep.subr.mxu0 0.0
    %270 = vmatpush1.xpose.msra.mxu0 0.0
    %271 = vmatprep.subr.mxu0 0.0
    %272 = vmatpush1.xpose.msra.mxu0 0.0
    %273 = vmatprep.subr.mxu0 0.0
    %274 = vmatpush1.xpose.msra.mxu0 0.0
    %275 = vmatprep.subr.mxu0 0.0
    %276 = vmatpush1.xpose.msra.mxu0 0.0
    %277 = vmatprep.subr.mxu0 0.0
    %278 = vmatpush1.xpose.msra.mxu0 0.0
    %279 = vmatprep.subr.mxu0 0.0
    %280 = vmatpush1.xpose.msra.mxu0 0.0
    %281 = vmatprep.subr.mxu0 0.0
    %282 = vmatpush1.xpose.msra.mxu0 0.0
    %283 = vmatprep.subr.mxu0 0.0
    %284 = vmatpush1.xpose.msra.mxu0 0.0
    %285 = vmatprep.subr.mxu0 0.0
    %286 = vmatpush1.xpose.msra.mxu0 %v253
    %287 = vmatprep.subr.mxu0 0.0
    %288 = vmatpush2.xpose.msra.mxu0 0.0
    %289 = vmatprep.subr.mxu0 0.0
    %290 = vmatpush2.xpose.msra.mxu0 0.0
    %291 = vmatprep.subr.mxu0 0.0
    %292 = vmatpush2.xpose.msra.mxu0 0.0
    %293 = vmatprep.subr.mxu0 0.0
    %294 = vmatpush2.xpose.msra.mxu0 0.0
    %295 = vmatprep.subr.mxu0 0.0
    %296 = vmatpush2.xpose.msra.mxu0 0.0
    %297 = vmatprep.subr.mxu0 0.0
    %298 = vmatpush2.xpose.msra.mxu0 0.0
    %299 = vmatprep.subr.mxu0 0.0
    %300 = vmatpush2.xpose.msra.mxu0 0.0
    %301 = vmatprep.subr.mxu0 0.0
    %302 = vmatpush2.xpose.msra.mxu0 0.0
    %303 = vmatprep.subr.mxu0 0.0
    %304 = vmatpush2.xpose.msra.mxu0 0.0
    %305 = vmatprep.subr.mxu0 0.0
    %306 = vmatpush2.xpose.msra.mxu0 0.0
    %307 = vmatprep.subr.mxu0 0.0
    %308 = vmatpush2.xpose.msra.mxu0 0.0
    %309 = vmatprep.subr.mxu0 0.0
    %310 = vmatpush2.xpose.msra.mxu0 0.0
    %311 = vmatprep.subr.mxu0 0.0
    %312 = vmatpush2.xpose.msra.mxu0 0.0
    %313 = vmatprep.subr.mxu0 0.0
    %314 = vmatpush2.xpose.msra.mxu0 0.0
    %315 = vmatprep.subr.mxu0 0.0
    %316 = vmatpush2.xpose.msra.mxu0 0.0
    %317 = vmatprep.subr.mxu0 0.0
    %318 = vmatpush2.xpose.msra.mxu0 0.0
    %319 = vmatprep.mubr.f32.mxu0 0.0
    %320 = vmatmul.mubr.f32.gmra.mxu0 %v251
    %v321 = vpop.f32.mrf.mxu0
    %v322 = vadd.f32 0.0, %v321
    %v323 = vpop.f32.mrf.mxu0
    %324 = vdwg.mxu0
    %325 = vrot.lane.b32.xlu0 %v165, 96
    %v326 = vpop.permute.xlu0 %325
    %v327 = vsel %vm174, %v165, 0
    %v329 = vsel %vm174, %v326, 0
    %331 = vmatprep.subr.mxu0 0.0
    %332 = vmatpush1.xpose.msra.mxu0 0.0
    %333 = vmatprep.subr.mxu0 0.0
    %334 = vmatpush1.xpose.msra.mxu0 0.0
    %335 = vmatprep.subr.mxu0 0.0
    %336 = vmatpush1.xpose.msra.mxu0 0.0
    %337 = vmatprep.subr.mxu0 0.0
    %338 = vmatpush1.xpose.msra.mxu0 0.0
    %339 = vmatprep.subr.mxu0 0.0
    %340 = vmatpush1.xpose.msra.mxu0 0.0
    %341 = vmatprep.subr.mxu0 0.0
    %342 = vmatpush1.xpose.msra.mxu0 0.0
    %343 = vmatprep.subr.mxu0 0.0
    %344 = vmatpush1.xpose.msra.mxu0 0.0
    %345 = vmatprep.subr.mxu0 0.0
    %346 = vmatpush1.xpose.msra.mxu0 0.0
    %347 = vmatprep.subr.mxu0 0.0
    %348 = vmatpush1.xpose.msra.mxu0 0.0
    %349 = vmatprep.subr.mxu0 0.0
    %350 = vmatpush1.xpose.msra.mxu0 0.0
    %351 = vmatprep.subr.mxu0 0.0
    %352 = vmatpush1.xpose.msra.mxu0 0.0
    %353 = vmatprep.subr.mxu0 0.0
    %354 = vmatpush1.xpose.msra.mxu0 0.0
    %355 = vmatprep.subr.mxu0 0.0
    %356 = vmatpush1.xpose.msra.mxu0 0.0
    %357 = vmatprep.subr.mxu0 0.0
    %358 = vmatpush1.xpose.msra.mxu0 0.0
    %359 = vmatprep.subr.mxu0 0.0
    %360 = vmatpush1.xpose.msra.mxu0 0.0
    %361 = vmatprep.subr.mxu0 0.0
    %362 = vmatpush1.xpose.msra.mxu0 %v329
    %363 = vmatprep.subr.mxu0 0.0
    %364 = vmatpush2.xpose.msra.mxu0 0.0
    %365 = vmatprep.subr.mxu0 0.0
    %366 = vmatpush2.xpose.msra.mxu0 0.0
    %367 = vmatprep.subr.mxu0 0.0
    %368 = vmatpush2.xpose.msra.mxu0 0.0
    %369 = vmatprep.subr.mxu0 0.0
    %370 = vmatpush2.xpose.msra.mxu0 0.0
    %371 = vmatprep.subr.mxu0 0.0
    %372 = vmatpush2.xpose.msra.mxu0 0.0
    %373 = vmatprep.subr.mxu0 0.0
    %374 = vmatpush2.xpose.msra.mxu0 0.0
    %375 = vmatprep.subr.mxu0 0.0
    %376 = vmatpush2.xpose.msra.mxu0 0.0
    %377 = vmatprep.subr.mxu0 0.0
    %378 = vmatpush2.xpose.msra.mxu0 0.0
    %379 = vmatprep.subr.mxu0 0.0
    %380 = vmatpush2.xpose.msra.mxu0 0.0
    %381 = vmatprep.subr.mxu0 0.0
    %382 = vmatpush2.xpose.msra.mxu0 0.0
    %383 = vmatprep.subr.mxu0 0.0
    %384 = vmatpush2.xpose.msra.mxu0 0.0
    %385 = vmatprep.subr.mxu0 0.0
    %386 = vmatpush2.xpose.msra.mxu0 0.0
    %387 = vmatprep.subr.mxu0 0.0
    %388 = vmatpush2.xpose.msra.mxu0 0.0
    %389 = vmatprep.subr.mxu0 0.0
    %390 = vmatpush2.xpose.msra.mxu0 0.0
    %391 = vmatprep.subr.mxu0 0.0
    %392 = vmatpush2.xpose.msra.mxu0 0.0
    %393 = vmatprep.subr.mxu0 0.0
    %394 = vmatpush2.xpose.msra.mxu0 0.0
    %395 = vmatprep.mubr.f32.mxu0 0.0
    %396 = vmatmul.mubr.f32.gmra.mxu0 %v327
    %v397 = vpop.f32.mrf.mxu0
    %v398 = vadd.f32 0.0, %v397
    %v399 = vpop.f32.mrf.mxu0
    %400 = vdwg.mxu0
    %401 = vrot.lane.b32.xlu0 %v169, 96
    %v402 = vpop.permute.xlu0 %401
    %v403 = vsel %vm174, %v169, 0
    %v405 = vsel %vm174, %v402, 0
    %407 = vmatprep.subr.mxu0 0.0
    %408 = vmatpush1.xpose.msra.mxu0 0.0
    %409 = vmatprep.subr.mxu0 0.0
    %410 = vmatpush1.xpose.msra.mxu0 0.0
    %411 = vmatprep.subr.mxu0 0.0
    %412 = vmatpush1.xpose.msra.mxu0 0.0
    %413 = vmatprep.subr.mxu0 0.0
    %414 = vmatpush1.xpose.msra.mxu0 0.0
    %415 = vmatprep.subr.mxu0 0.0
    %416 = vmatpush1.xpose.msra.mxu0 0.0
    %417 = vmatprep.subr.mxu0 0.0
    %418 = vmatpush1.xpose.msra.mxu0 0.0
    %419 = vmatprep.subr.mxu0 0.0
    %420 = vmatpush1.xpose.msra.mxu0 0.0
    %421 = vmatprep.subr.mxu0 0.0
    %422 = vmatpush1.xpose.msra.mxu0 0.0
    %423 = vmatprep.subr.mxu0 0.0
    %424 = vmatpush1.xpose.msra.mxu0 0.0
    %425 = vmatprep.subr.mxu0 0.0
    %426 = vmatpush1.xpose.msra.mxu0 0.0
    %427 = vmatprep.subr.mxu0 0.0
    %428 = vmatpush1.xpose.msra.mxu0 0.0
    %429 = vmatprep.subr.mxu0 0.0
    %430 = vmatpush1.xpose.msra.mxu0 0.0
    %431 = vmatprep.subr.mxu0 0.0
    %432 = vmatpush1.xpose.msra.mxu0 0.0
    %433 = vmatprep.subr.mxu0 0.0
    %434 = vmatpush1.xpose.msra.mxu0 0.0
    %435 = vmatprep.subr.mxu0 0.0
    %436 = vmatpush1.xpose.msra.mxu0 0.0
    %437 = vmatprep.subr.mxu0 0.0
    %438 = vmatpush1.xpose.msra.mxu0 %v405
    %439 = vmatprep.subr.mxu0 0.0
    %440 = vmatpush2.xpose.msra.mxu0 0.0
    %441 = vmatprep.subr.mxu0 0.0
    %442 = vmatpush2.xpose.msra.mxu0 0.0
    %443 = vmatprep.subr.mxu0 0.0
    %444 = vmatpush2.xpose.msra.mxu0 0.0
    %445 = vmatprep.subr.mxu0 0.0
    %446 = vmatpush2.xpose.msra.mxu0 0.0
    %447 = vmatprep.subr.mxu0 0.0
    %448 = vmatpush2.xpose.msra.mxu0 0.0
    %449 = vmatprep.subr.mxu0 0.0
    %450 = vmatpush2.xpose.msra.mxu0 0.0
    %451 = vmatprep.subr.mxu0 0.0
    %452 = vmatpush2.xpose.msra.mxu0 0.0
    %453 = vmatprep.subr.mxu0 0.0
    %454 = vmatpush2.xpose.msra.mxu0 0.0
    %455 = vmatprep.subr.mxu0 0.0
    %456 = vmatpush2.xpose.msra.mxu0 0.0
    %457 = vmatprep.subr.mxu0 0.0
    %458 = vmatpush2.xpose.msra.mxu0 0.0
    %459 = vmatprep.subr.mxu0 0.0
    %460 = vmatpush2.xpose.msra.mxu0 0.0
    %461 = vmatprep.subr.mxu0 0.0
    %462 = vmatpush2.xpose.msra.mxu0 0.0
    %463 = vmatprep.subr.mxu0 0.0
    %464 = vmatpush2.xpose.msra.mxu0 0.0
    %465 = vmatprep.subr.mxu0 0.0
    %466 = vmatpush2.xpose.msra.mxu0 0.0
    %467 = vmatprep.subr.mxu0 0.0
    %468 = vmatpush2.xpose.msra.mxu0 0.0
    %469 = vmatprep.subr.mxu0 0.0
    %470 = vmatpush2.xpose.msra.mxu0 0.0
    %471 = vmatprep.mubr.f32.mxu0 0.0
    %472 = vmatmul.mubr.f32.gmra.mxu0 %v403
    %v473 = vpop.f32.mrf.mxu0
    %v474 = vadd.f32 0.0, %v473
    %v475 = vpop.f32.mrf.mxu0
    %476 = vdwg.mxu0
    %477 = vrot.lane.b32.xlu0 %v155, 96
    %v478 = vpop.permute.xlu0 %477
    %v479 = vsel %vm174, %v155, 0
    %v481 = vsel %vm174, %v478, 0
    %483 = vmatprep.subr.mxu0 0.0
    %484 = vmatpush1.xpose.msra.mxu0 0.0
    %485 = vmatprep.subr.mxu0 0.0
    %486 = vmatpush1.xpose.msra.mxu0 0.0
    %487 = vmatprep.subr.mxu0 0.0
    %488 = vmatpush1.xpose.msra.mxu0 0.0
    %489 = vmatprep.subr.mxu0 0.0
    %490 = vmatpush1.xpose.msra.mxu0 0.0
    %491 = vmatprep.subr.mxu0 0.0
    %492 = vmatpush1.xpose.msra.mxu0 0.0
    %493 = vmatprep.subr.mxu0 0.0
    %494 = vmatpush1.xpose.msra.mxu0 0.0
    %495 = vmatprep.subr.mxu0 0.0
    %496 = vmatpush1.xpose.msra.mxu0 0.0
    %497 = vmatprep.subr.mxu0 0.0
    %498 = vmatpush1.xpose.msra.mxu0 0.0
    %499 = vmatprep.subr.mxu0 0.0
    %500 = vmatpush1.xpose.msra.mxu0 0.0
    %501 = vmatprep.subr.mxu0 0.0
    %502 = vmatpush1.xpose.msra.mxu0 0.0
    %503 = vmatprep.subr.mxu0 0.0
    %504 = vmatpush1.xpose.msra.mxu0 0.0
    %505 = vmatprep.subr.mxu0 0.0
    %506 = vmatpush1.xpose.msra.mxu0 0.0
    %507 = vmatprep.subr.mxu0 0.0
    %508 = vmatpush1.xpose.msra.mxu0 0.0
    %509 = vmatprep.subr.mxu0 0.0
    %510 = vmatpush1.xpose.msra.mxu0 0.0
    %511 = vmatprep.subr.mxu0 0.0
    %512 = vmatpush1.xpose.msra.mxu0 0.0
    %513 = vmatprep.subr.mxu0 0.0
    %514 = vmatpush1.xpose.msra.mxu0 %v481
    %515 = vmatprep.subr.mxu0 0.0
    %516 = vmatpush2.xpose.msra.mxu0 0.0
    %517 = vmatprep.subr.mxu0 0.0
    %518 = vmatpush2.xpose.msra.mxu0 0.0
    %519 = vmatprep.subr.mxu0 0.0
    %520 = vmatpush2.xpose.msra.mxu0 0.0
    %521 = vmatprep.subr.mxu0 0.0
    %522 = vmatpush2.xpose.msra.mxu0 0.0
    %523 = vmatprep.subr.mxu0 0.0
    %524 = vmatpush2.xpose.msra.mxu0 0.0
    %525 = vmatprep.subr.mxu0 0.0
    %526 = vmatpush2.xpose.msra.mxu0 0.0
    %527 = vmatprep.subr.mxu0 0.0
    %528 = vmatpush2.xpose.msra.mxu0 0.0
    %529 = vmatprep.subr.mxu0 0.0
    %530 = vmatpush2.xpose.msra.mxu0 0.0
    %531 = vmatprep.subr.mxu0 0.0
    %532 = vmatpush2.xpose.msra.mxu0 0.0
    %533 = vmatprep.subr.mxu0 0.0
    %534 = vmatpush2.xpose.msra.mxu0 0.0
    %535 = vmatprep.subr.mxu0 0.0
    %536 = vmatpush2.xpose.msra.mxu0 0.0
    %537 = vmatprep.subr.mxu0 0.0
    %538 = vmatpush2.xpose.msra.mxu0 0.0
    %539 = vmatprep.subr.mxu0 0.0
    %540 = vmatpush2.xpose.msra.mxu0 0.0
    %541 = vmatprep.subr.mxu0 0.0
    %542 = vmatpush2.xpose.msra.mxu0 0.0
    %543 = vmatprep.subr.mxu0 0.0
    %544 = vmatpush2.xpose.msra.mxu0 0.0
    %545 = vmatprep.subr.mxu0 0.0
    %546 = vmatpush2.xpose.msra.mxu0 0.0
    %547 = vmatprep.mubr.f32.mxu0 0.0
    %548 = vmatmul.mubr.f32.gmra.mxu0 %v479
    %v549 = vpop.f32.mrf.mxu0
    %v550 = vadd.f32 0.0, %v549
    %v551 = vpop.f32.mrf.mxu0
    %552 = vdwg.mxu0
    %553 = vrot.lane.b32.xlu0 %v163, 96
    %v554 = vpop.permute.xlu0 %553
    %v555 = vsel %vm174, %v163, 0
    %v557 = vsel %vm174, %v554, 0
    %559 = vmatprep.subr.mxu0 0.0
    %560 = vmatpush1.xpose.msra.mxu0 0.0
    %561 = vmatprep.subr.mxu0 0.0
    %562 = vmatpush1.xpose.msra.mxu0 0.0
    %563 = vmatprep.subr.mxu0 0.0
    %564 = vmatpush1.xpose.msra.mxu0 0.0
    %565 = vmatprep.subr.mxu0 0.0
    %566 = vmatpush1.xpose.msra.mxu0 0.0
    %567 = vmatprep.subr.mxu0 0.0
    %568 = vmatpush1.xpose.msra.mxu0 0.0
    %569 = vmatprep.subr.mxu0 0.0
    %570 = vmatpush1.xpose.msra.mxu0 0.0
    %571 = vmatprep.subr.mxu0 0.0
    %572 = vmatpush1.xpose.msra.mxu0 0.0
    %573 = vmatprep.subr.mxu0 0.0
    %574 = vmatpush1.xpose.msra.mxu0 0.0
    %575 = vmatprep.subr.mxu0 0.0
    %576 = vmatpush1.xpose.msra.mxu0 0.0
    %577 = vmatprep.subr.mxu0 0.0
    %578 = vmatpush1.xpose.msra.mxu0 0.0
    %579 = vmatprep.subr.mxu0 0.0
    %580 = vmatpush1.xpose.msra.mxu0 0.0
    %581 = vmatprep.subr.mxu0 0.0
    %582 = vmatpush1.xpose.msra.mxu0 0.0
    %583 = vmatprep.subr.mxu0 0.0
    %584 = vmatpush1.xpose.msra.mxu0 0.0
    %585 = vmatprep.subr.mxu0 0.0
    %586 = vmatpush1.xpose.msra.mxu0 0.0
    %587 = vmatprep.subr.mxu0 0.0
    %588 = vmatpush1.xpose.msra.mxu0 0.0
    %589 = vmatprep.subr.mxu0 0.0
    %590 = vmatpush1.xpose.msra.mxu0 %v557
    %591 = vmatprep.subr.mxu0 0.0
    %592 = vmatpush2.xpose.msra.mxu0 0.0
    %593 = vmatprep.subr.mxu0 0.0
    %594 = vmatpush2.xpose.msra.mxu0 0.0
    %595 = vmatprep.subr.mxu0 0.0
    %596 = vmatpush2.xpose.msra.mxu0 0.0
    %597 = vmatprep.subr.mxu0 0.0
    %598 = vmatpush2.xpose.msra.mxu0 0.0
    %599 = vmatprep.subr.mxu0 0.0
    %600 = vmatpush2.xpose.msra.mxu0 0.0
    %601 = vmatprep.subr.mxu0 0.0
    %602 = vmatpush2.xpose.msra.mxu0 0.0
    %603 = vmatprep.subr.mxu0 0.0
    %604 = vmatpush2.xpose.msra.mxu0 0.0
    %605 = vmatprep.subr.mxu0 0.0
    %606 = vmatpush2.xpose.msra.mxu0 0.0
    %607 = vmatprep.subr.mxu0 0.0
    %608 = vmatpush2.xpose.msra.mxu0 0.0
    %609 = vmatprep.subr.mxu0 0.0
    %610 = vmatpush2.xpose.msra.mxu0 0.0
    %611 = vmatprep.subr.mxu0 0.0
    %612 = vmatpush2.xpose.msra.mxu0 0.0
    %613 = vmatprep.subr.mxu0 0.0
    %614 = vmatpush2.xpose.msra.mxu0 0.0
    %615 = vmatprep.subr.mxu0 0.0
    %616 = vmatpush2.xpose.msra.mxu0 0.0
    %617 = vmatprep.subr.mxu0 0.0
    %618 = vmatpush2.xpose.msra.mxu0 0.0
    %619 = vmatprep.subr.mxu0 0.0
    %620 = vmatpush2.xpose.msra.mxu0 0.0
    %621 = vmatprep.subr.mxu0 0.0
    %622 = vmatpush2.xpose.msra.mxu0 0.0
    %623 = vmatprep.mubr.f32.mxu0 0.0
    %624 = vmatmul.mubr.f32.gmra.mxu0 %v555
    %v625 = vpop.f32.mrf.mxu0
    %v626 = vadd.f32 0.0, %v625
    %v627 = vpop.f32.mrf.mxu0
    %628 = vdwg.mxu0
    %629 = vrot.lane.b32.xlu0 %v167, 96
    %v630 = vpop.permute.xlu0 %629
    %v631 = vsel %vm174, %v167, 0
    %v633 = vsel %vm174, %v630, 0
    %635 = vmatprep.subr.mxu0 0.0
    %636 = vmatpush1.xpose.msra.mxu0 0.0
    %637 = vmatprep.subr.mxu0 0.0
    %638 = vmatpush1.xpose.msra.mxu0 0.0
    %639 = vmatprep.subr.mxu0 0.0
    %640 = vmatpush1.xpose.msra.mxu0 0.0
    %641 = vmatprep.subr.mxu0 0.0
    %642 = vmatpush1.xpose.msra.mxu0 0.0
    %643 = vmatprep.subr.mxu0 0.0
    %644 = vmatpush1.xpose.msra.mxu0 0.0
    %645 = vmatprep.subr.mxu0 0.0
    %646 = vmatpush1.xpose.msra.mxu0 0.0
    %647 = vmatprep.subr.mxu0 0.0
    %648 = vmatpush1.xpose.msra.mxu0 0.0
    %649 = vmatprep.subr.mxu0 0.0
    %650 = vmatpush1.xpose.msra.mxu0 0.0
    %651 = vmatprep.subr.mxu0 0.0
    %652 = vmatpush1.xpose.msra.mxu0 0.0
    %653 = vmatprep.subr.mxu0 0.0
    %654 = vmatpush1.xpose.msra.mxu0 0.0
    %655 = vmatprep.subr.mxu0 0.0
    %656 = vmatpush1.xpose.msra.mxu0 0.0
    %657 = vmatprep.subr.mxu0 0.0
    %658 = vmatpush1.xpose.msra.mxu0 0.0
    %659 = vmatprep.subr.mxu0 0.0
    %660 = vmatpush1.xpose.msra.mxu0 0.0
    %661 = vmatprep.subr.mxu0 0.0
    %662 = vmatpush1.xpose.msra.mxu0 0.0
    %663 = vmatprep.subr.mxu0 0.0
    %664 = vmatpush1.xpose.msra.mxu0 0.0
    %665 = vmatprep.subr.mxu0 0.0
    %666 = vmatpush1.xpose.msra.mxu0 %v633
    %667 = vmatprep.subr.mxu0 0.0
    %668 = vmatpush2.xpose.msra.mxu0 0.0
    %669 = vmatprep.subr.mxu0 0.0
    %670 = vmatpush2.xpose.msra.mxu0 0.0
    %671 = vmatprep.subr.mxu0 0.0
    %672 = vmatpush2.xpose.msra.mxu0 0.0
    %673 = vmatprep.subr.mxu0 0.0
    %674 = vmatpush2.xpose.msra.mxu0 0.0
    %675 = vmatprep.subr.mxu0 0.0
    %676 = vmatpush2.xpose.msra.mxu0 0.0
    %677 = vmatprep.subr.mxu0 0.0
    %678 = vmatpush2.xpose.msra.mxu0 0.0
    %679 = vmatprep.subr.mxu0 0.0
    %680 = vmatpush2.xpose.msra.mxu0 0.0
    %681 = vmatprep.subr.mxu0 0.0
    %682 = vmatpush2.xpose.msra.mxu0 0.0
    %683 = vmatprep.subr.mxu0 0.0
    %684 = vmatpush2.xpose.msra.mxu0 0.0
    %685 = vmatprep.subr.mxu0 0.0
    %686 = vmatpush2.xpose.msra.mxu0 0.0
    %687 = vmatprep.subr.mxu0 0.0
    %688 = vmatpush2.xpose.msra.mxu0 0.0
    %689 = vmatprep.subr.mxu0 0.0
    %690 = vmatpush2.xpose.msra.mxu0 0.0
    %691 = vmatprep.subr.mxu0 0.0
    %692 = vmatpush2.xpose.msra.mxu0 0.0
    %693 = vmatprep.subr.mxu0 0.0
    %694 = vmatpush2.xpose.msra.mxu0 0.0
    %695 = vmatprep.subr.mxu0 0.0
    %696 = vmatpush2.xpose.msra.mxu0 0.0
    %697 = vmatprep.subr.mxu0 0.0
    %698 = vmatpush2.xpose.msra.mxu0 0.0
    %699 = vmatprep.mubr.f32.mxu0 0.0
    %700 = vmatmul.mubr.f32.gmra.mxu0 %v631
    %v701 = vpop.f32.mrf.mxu0
    %v702 = vadd.f32 0.0, %v701
    %v703 = vpop.f32.mrf.mxu0
    %704 = vdwg.mxu0
    %705 = vrot.lane.b32.xlu0 %v171, 96
    %v706 = vpop.permute.xlu0 %705
    %v707 = vsel %vm174, %v171, 0
    %v709 = vsel %vm174, %v706, 0
    %711 = vmatprep.subr.mxu0 0.0
    %712 = vmatpush1.xpose.msra.mxu0 0.0
    %713 = vmatprep.subr.mxu0 0.0
    %714 = vmatpush1.xpose.msra.mxu0 0.0
    %715 = vmatprep.subr.mxu0 0.0
    %716 = vmatpush1.xpose.msra.mxu0 0.0
    %717 = vmatprep.subr.mxu0 0.0
    %718 = vmatpush1.xpose.msra.mxu0 0.0
    %719 = vmatprep.subr.mxu0 0.0
    %720 = vmatpush1.xpose.msra.mxu0 0.0
    %721 = vmatprep.subr.mxu0 0.0
    %722 = vmatpush1.xpose.msra.mxu0 0.0
    %723 = vmatprep.subr.mxu0 0.0
    %724 = vmatpush1.xpose.msra.mxu0 0.0
    %725 = vmatprep.subr.mxu0 0.0
    %726 = vmatpush1.xpose.msra.mxu0 0.0
    %727 = vmatprep.subr.mxu0 0.0
    %728 = vmatpush1.xpose.msra.mxu0 0.0
    %729 = vmatprep.subr.mxu0 0.0
    %730 = vmatpush1.xpose.msra.mxu0 0.0
    %731 = vmatprep.subr.mxu0 0.0
    %732 = vmatpush1.xpose.msra.mxu0 0.0
    %733 = vmatprep.subr.mxu0 0.0
    %734 = vmatpush1.xpose.msra.mxu0 0.0
    %735 = vmatprep.subr.mxu0 0.0
    %736 = vmatpush1.xpose.msra.mxu0 0.0
    %737 = vmatprep.subr.mxu0 0.0
    %738 = vmatpush1.xpose.msra.mxu0 0.0
    %739 = vmatprep.subr.mxu0 0.0
    %740 = vmatpush1.xpose.msra.mxu0 0.0
    %741 = vmatprep.subr.mxu0 0.0
    %742 = vmatpush1.xpose.msra.mxu0 %v709
    %743 = vmatprep.subr.mxu0 0.0
    %744 = vmatpush2.xpose.msra.mxu0 0.0
    %745 = vmatprep.subr.mxu0 0.0
    %746 = vmatpush2.xpose.msra.mxu0 0.0
    %747 = vmatprep.subr.mxu0 0.0
    %748 = vmatpush2.xpose.msra.mxu0 0.0
    %749 = vmatprep.subr.mxu0 0.0
    %750 = vmatpush2.xpose.msra.mxu0 0.0
    %751 = vmatprep.subr.mxu0 0.0
    %752 = vmatpush2.xpose.msra.mxu0 0.0
    %753 = vmatprep.subr.mxu0 0.0
    %754 = vmatpush2.xpose.msra.mxu0 0.0
    %755 = vmatprep.subr.mxu0 0.0
    %756 = vmatpush2.xpose.msra.mxu0 0.0
    %757 = vmatprep.subr.mxu0 0.0
    %758 = vmatpush2.xpose.msra.mxu0 0.0
    %759 = vmatprep.subr.mxu0 0.0
    %760 = vmatpush2.xpose.msra.mxu0 0.0
    %761 = vmatprep.subr.mxu0 0.0
    %762 = vmatpush2.xpose.msra.mxu0 0.0
    %763 = vmatprep.subr.mxu0 0.0
    %764 = vmatpush2.xpose.msra.mxu0 0.0
    %765 = vmatprep.subr.mxu0 0.0
    %766 = vmatpush2.xpose.msra.mxu0 0.0
    %767 = vmatprep.subr.mxu0 0.0
    %768 = vmatpush2.xpose.msra.mxu0 0.0
    %769 = vmatprep.subr.mxu0 0.0
    %770 = vmatpush2.xpose.msra.mxu0 0.0
    %771 = vmatprep.subr.mxu0 0.0
    %772 = vmatpush2.xpose.msra.mxu0 0.0
    %773 = vmatprep.subr.mxu0 0.0
    %774 = vmatpush2.xpose.msra.mxu0 0.0
    %775 = vmatprep.mubr.f32.mxu0 0.0
    %776 = vmatmul.mubr.f32.gmra.mxu0 %v707
    %v777 = vpop.f32.mrf.mxu0
    %v778 = vadd.f32 0.0, %v777
    %v779 = vpop.f32.mrf.mxu0
    %780 = vdwg.mxu0
    %v781 = vsel %vm174, %v246, -inf
    %782 = vmax.xlane.f32.xlu0 %v781
    %v783 = vpop.xlane.xlu0 %782
    %v784 = vsel %vm174, %v322, -inf
    %785 = vmax.xlane.f32.xlu0 %v784
    %v786 = vpop.xlane.xlu0 %785
    %v787 = vsel %vm174, %v398, -inf
    %788 = vmax.xlane.f32.xlu0 %v787
    %v789 = vpop.xlane.xlu0 %788
    %v790 = vsel %vm174, %v474, -inf
    %791 = vmax.xlane.f32.xlu0 %v790
    %v792 = vpop.xlane.xlu0 %791
    %v793 = vsel %vm174, %v550, -inf
    %794 = vmax.xlane.f32.xlu0 %v793
    %v795 = vpop.xlane.xlu0 %794
    %v796 = vsel %vm174, %v626, -inf
    %797 = vmax.xlane.f32.xlu0 %v796
    %v798 = vpop.xlane.xlu0 %797
    %v799 = vsel %vm174, %v702, -inf
    %800 = vmax.xlane.f32.xlu0 %v799
    %v801 = vpop.xlane.xlu0 %800
    %v802 = vsel %vm174, %v778, -inf
    %803 = vmax.xlane.f32.xlu0 %v802
    %v804 = vpop.xlane.xlu0 %803
    %v805 = vsub.f32 %v246, %v783
    %v806 = vsub.f32 %v322, %v786
    %v807 = vsub.f32 %v398, %v789
    %v808 = vsub.f32 %v474, %v792
    %v809 = vsub.f32 %v550, %v795
    %v810 = vsub.f32 %v626, %v798
    %v811 = vsub.f32 %v702, %v801
    %v812 = vsub.f32 %v778, %v804
    %v813 = vmul.f32 %v805, 1.442695
    %v814 = vpow.pop %v813
    %v815 = vmul.f32 %v806, 1.442695
    %v816 = vpow.pop %v815
    %v817 = vmul.f32 %v807, 1.442695
    %v818 = vpow.pop %v817
    %v819 = vmul.f32 %v808, 1.442695
    %v820 = vpow.pop %v819
    %v821 = vmul.f32 %v809, 1.442695
    %v822 = vpow.pop %v821
    %v823 = vmul.f32 %v810, 1.442695
    %v824 = vpow.pop %v823
    %v825 = vmul.f32 %v811, 1.442695
    %v826 = vpow.pop %v825
    %v827 = vmul.f32 %v812, 1.442695
    %v828 = vpow.pop %v827
    %v829 = vsel %vm174, %v814, 0.0
    %830 = vadd.xlane.f32.xlu0 %v829
    %v831 = vpop.xlane.xlu0 %830
    %v832 = vsel %vm174, %v816, 0.0
    %833 = vadd.xlane.f32.xlu0 %v832
    %v834 = vpop.xlane.xlu0 %833
    %v835 = vsel %vm174, %v818, 0.0
    %836 = vadd.xlane.f32.xlu0 %v835
    %v837 = vpop.xlane.xlu0 %836
    %v838 = vsel %vm174, %v820, 0.0
    %839 = vadd.xlane.f32.xlu0 %v838
    %v840 = vpop.xlane.xlu0 %839
    %v841 = vsel %vm174, %v822, 0.0
    %842 = vadd.xlane.f32.xlu0 %v841
    %v843 = vpop.xlane.xlu0 %842
    %v844 = vsel %vm174, %v824, 0.0
    %845 = vadd.xlane.f32.xlu0 %v844
    %v846 = vpop.xlane.xlu0 %845
    %v847 = vsel %vm174, %v826, 0.0
    %848 = vadd.xlane.f32.xlu0 %v847
    %v849 = vpop.xlane.xlu0 %848
    %v850 = vsel %vm174, %v828, 0.0
    %851 = vadd.xlane.f32.xlu0 %v850
    %v852 = vpop.xlane.xlu0 %851
    %v853 = vrcp.pop %v831
    %v854 = vrcp.pop %v834
    %v855 = vrcp.pop %v837
    %v856 = vrcp.pop %v840
    %v857 = vrcp.pop %v843
    %v858 = vrcp.pop %v846
    %v859 = vrcp.pop %v849
    %v860 = vrcp.pop %v852
    %v861 = vmul.f32 %v814, %v853
    %v862 = vmul.f32 %v816, %v854
    %v863 = vmul.f32 %v818, %v855
    %v864 = vmul.f32 %v820, %v856
    %v865 = vmul.f32 %v822, %v857
    %v866 = vmul.f32 %v824, %v858
    %v867 = vmul.f32 %v826, %v859
    %v868 = vmul.f32 %v828, %v860
    %869 = vrot.lane.b32.xlu0 %v150, 64
    %v870 = vpop.permute.xlu0 %869
    %v873 = vsel %vm174, %v861, 0
    %875 = vmatprep.subr.mxu0 0.0
    %876 = vmatpush1.msra.mxu0 0.0
    %877 = vmatprep.subr.mxu0 0.0
    %878 = vmatpush1.msra.mxu0 0.0
    %879 = vmatprep.subr.mxu0 0.0
    %880 = vmatpush1.msra.mxu0 0.0
    %881 = vmatprep.subr.mxu0 0.0
    %882 = vmatpush1.msra.mxu0 0.0
    %883 = vmatprep.subr.mxu0 0.0
    %884 = vmatpush1.msra.mxu0 0.0
    %885 = vmatprep.subr.mxu0 0.0
    %886 = vmatpush1.msra.mxu0 0.0
    %887 = vmatprep.subr.mxu0 0.0
    %888 = vmatpush1.msra.mxu0 0.0
    %889 = vmatprep.subr.mxu0 0.0
    %890 = vmatpush1.msra.mxu0 0.0
    %891 = vmatprep.subr.mxu0 0.0
    %892 = vmatpush1.msra.mxu0 0.0
    %893 = vmatprep.subr.mxu0 0.0
    %894 = vmatpush1.msra.mxu0 0.0
    %895 = vmatprep.subr.mxu0 0.0
    %896 = vmatpush1.msra.mxu0 0.0
    %897 = vmatprep.subr.mxu0 0.0
    %898 = vmatpush1.msra.mxu0 0.0
    %899 = vmatprep.subr.mxu0 0.0
    %900 = vmatpush1.msra.mxu0 0.0
    %901 = vmatprep.subr.mxu0 0.0
    %902 = vmatpush1.msra.mxu0 0.0
    %903 = vmatprep.subr.mxu0 0.0
    %904 = vmatpush1.msra.mxu0 0.0
    %905 = vmatprep.subr.mxu0 0.0
    %906 = vmatpush1.msra.mxu0 %v870
    %907 = vmatprep.subr.mxu0 0.0
    %908 = vmatpush2.msra.mxu0 0.0
    %909 = vmatprep.subr.mxu0 0.0
    %910 = vmatpush2.msra.mxu0 0.0
    %911 = vmatprep.subr.mxu0 0.0
    %912 = vmatpush2.msra.mxu0 0.0
    %913 = vmatprep.subr.mxu0 0.0
    %914 = vmatpush2.msra.mxu0 0.0
    %915 = vmatprep.subr.mxu0 0.0
    %916 = vmatpush2.msra.mxu0 0.0
    %917 = vmatprep.subr.mxu0 0.0
    %918 = vmatpush2.msra.mxu0 0.0
    %919 = vmatprep.subr.mxu0 0.0
    %920 = vmatpush2.msra.mxu0 0.0
    %921 = vmatprep.subr.mxu0 0.0
    %922 = vmatpush2.msra.mxu0 0.0
    %923 = vmatprep.subr.mxu0 0.0
    %924 = vmatpush2.msra.mxu0 0.0
    %925 = vmatprep.subr.mxu0 0.0
    %926 = vmatpush2.msra.mxu0 0.0
    %927 = vmatprep.subr.mxu0 0.0
    %928 = vmatpush2.msra.mxu0 0.0
    %929 = vmatprep.subr.mxu0 0.0
    %930 = vmatpush2.msra.mxu0 0.0
    %931 = vmatprep.subr.mxu0 0.0
    %932 = vmatpush2.msra.mxu0 0.0
    %933 = vmatprep.subr.mxu0 0.0
    %934 = vmatpush2.msra.mxu0 0.0
    %935 = vmatprep.subr.mxu0 0.0
    %936 = vmatpush2.msra.mxu0 0.0
    %937 = vmatprep.subr.mxu0 0.0
    %938 = vmatpush2.msra.mxu0 0.0
    %939 = vmatprep.mubr.f32.mxu0 0.0
    %940 = vmatmul.mubr.f32.gmra.mxu0 %v873
    %v941 = vpop.f32.mrf.mxu0
    %v942 = vadd.f32 0.0, %v941
    %v943 = vpop.f32.mrf.mxu0
    %944 = vdwg.mxu0
    %945 = vrot.lane.b32.xlu0 %v161, 64
    %v946 = vpop.permute.xlu0 %945
    %v949 = vsel %vm174, %v862, 0
    %951 = vmatprep.subr.mxu0 0.0
    %952 = vmatpush1.msra.mxu0 0.0
    %953 = vmatprep.subr.mxu0 0.0
    %954 = vmatpush1.msra.mxu0 0.0
    %955 = vmatprep.subr.mxu0 0.0
    %956 = vmatpush1.msra.mxu0 0.0
    %957 = vmatprep.subr.mxu0 0.0
    %958 = vmatpush1.msra.mxu0 0.0
    %959 = vmatprep.subr.mxu0 0.0
    %960 = vmatpush1.msra.mxu0 0.0
    %961 = vmatprep.subr.mxu0 0.0
    %962 = vmatpush1.msra.mxu0 0.0
    %963 = vmatprep.subr.mxu0 0.0
    %964 = vmatpush1.msra.mxu0 0.0
    %965 = vmatprep.subr.mxu0 0.0
    %966 = vmatpush1.msra.mxu0 0.0
    %967 = vmatprep.subr.mxu0 0.0
    %968 = vmatpush1.msra.mxu0 0.0
    %969 = vmatprep.subr.mxu0 0.0
    %970 = vmatpush1.msra.mxu0 0.0
    %971 = vmatprep.subr.mxu0 0.0
    %972 = vmatpush1.msra.mxu0 0.0
    %973 = vmatprep.subr.mxu0 0.0
    %974 = vmatpush1.msra.mxu0 0.0
    %975 = vmatprep.subr.mxu0 0.0
    %976 = vmatpush1.msra.mxu0 0.0
    %977 = vmatprep.subr.mxu0 0.0
    %978 = vmatpush1.msra.mxu0 0.0
    %979 = vmatprep.subr.mxu0 0.0
    %980 = vmatpush1.msra.mxu0 0.0
    %981 = vmatprep.subr.mxu0 0.0
    %982 = vmatpush1.msra.mxu0 %v946
    %983 = vmatprep.subr.mxu0 0.0
    %984 = vmatpush2.msra.mxu0 0.0
    %985 = vmatprep.subr.mxu0 0.0
    %986 = vmatpush2.msra.mxu0 0.0
    %987 = vmatprep.subr.mxu0 0.0
    %988 = vmatpush2.msra.mxu0 0.0
    %989 = vmatprep.subr.mxu0 0.0
    %990 = vmatpush2.msra.mxu0 0.0
    %991 = vmatprep.subr.mxu0 0.0
    %992 = vmatpush2.msra.mxu0 0.0
    %993 = vmatprep.subr.mxu0 0.0
    %994 = vmatpush2.msra.mxu0 0.0
    %995 = vmatprep.subr.mxu0 0.0
    %996 = vmatpush2.msra.mxu0 0.0
    %997 = vmatprep.subr.mxu0 0.0
    %998 = vmatpush2.msra.mxu0 0.0
    %999 = vmatprep.subr.mxu0 0.0
    %1000 = vmatpush2.msra.mxu0 0.0
    %1001 = vmatprep.subr.mxu0 0.0
    %1002 = vmatpush2.msra.mxu0 0.0
    %1003 = vmatprep.subr.mxu0 0.0
    %1004 = vmatpush2.msra.mxu0 0.0
    %1005 = vmatprep.subr.mxu0 0.0
    %1006 = vmatpush2.msra.mxu0 0.0
    %1007 = vmatprep.subr.mxu0 0.0
    %1008 = vmatpush2.msra.mxu0 0.0
    %1009 = vmatprep.subr.mxu0 0.0
    %1010 = vmatpush2.msra.mxu0 0.0
    %1011 = vmatprep.subr.mxu0 0.0
    %1012 = vmatpush2.msra.mxu0 0.0
    %1013 = vmatprep.subr.mxu0 0.0
    %1014 = vmatpush2.msra.mxu0 0.0
    %1015 = vmatprep.mubr.f32.mxu0 0.0
    %1016 = vmatmul.mubr.f32.gmra.mxu0 %v949
    %v1017 = vpop.f32.mrf.mxu0
    %v1018 = vadd.f32 0.0, %v1017
    %v1019 = vpop.f32.mrf.mxu0
    %1020 = vdwg.mxu0
    %1021 = vrot.lane.b32.xlu0 %v165, 64
    %v1022 = vpop.permute.xlu0 %1021
    %v1025 = vsel %vm174, %v863, 0
    %1027 = vmatprep.subr.mxu0 0.0
    %1028 = vmatpush1.msra.mxu0 0.0
    %1029 = vmatprep.subr.mxu0 0.0
    %1030 = vmatpush1.msra.mxu0 0.0
    %1031 = vmatprep.subr.mxu0 0.0
    %1032 = vmatpush1.msra.mxu0 0.0
    %1033 = vmatprep.subr.mxu0 0.0
    %1034 = vmatpush1.msra.mxu0 0.0
    %1035 = vmatprep.subr.mxu0 0.0
    %1036 = vmatpush1.msra.mxu0 0.0
    %1037 = vmatprep.subr.mxu0 0.0
    %1038 = vmatpush1.msra.mxu0 0.0
    %1039 = vmatprep.subr.mxu0 0.0
    %1040 = vmatpush1.msra.mxu0 0.0
    %1041 = vmatprep.subr.mxu0 0.0
    %1042 = vmatpush1.msra.mxu0 0.0
    %1043 = vmatprep.subr.mxu0 0.0
    %1044 = vmatpush1.msra.mxu0 0.0
    %1045 = vmatprep.subr.mxu0 0.0
    %1046 = vmatpush1.msra.mxu0 0.0
    %1047 = vmatprep.subr.mxu0 0.0
    %1048 = vmatpush1.msra.mxu0 0.0
    %1049 = vmatprep.subr.mxu0 0.0
    %1050 = vmatpush1.msra.mxu0 0.0
    %1051 = vmatprep.subr.mxu0 0.0
    %1052 = vmatpush1.msra.mxu0 0.0
    %1053 = vmatprep.subr.mxu0 0.0
    %1054 = vmatpush1.msra.mxu0 0.0
    %1055 = vmatprep.subr.mxu0 0.0
    %1056 = vmatpush1.msra.mxu0 0.0
    %1057 = vmatprep.subr.mxu0 0.0
    %1058 = vmatpush1.msra.mxu0 %v1022
    %1059 = vmatprep.subr.mxu0 0.0
    %1060 = vmatpush2.msra.mxu0 0.0
    %1061 = vmatprep.subr.mxu0 0.0
    %1062 = vmatpush2.msra.mxu0 0.0
    %1063 = vmatprep.subr.mxu0 0.0
    %1064 = vmatpush2.msra.mxu0 0.0
    %1065 = vmatprep.subr.mxu0 0.0
    %1066 = vmatpush2.msra.mxu0 0.0
    %1067 = vmatprep.subr.mxu0 0.0
    %1068 = vmatpush2.msra.mxu0 0.0
    %1069 = vmatprep.subr.mxu0 0.0
    %1070 = vmatpush2.msra.mxu0 0.0
    %1071 = vmatprep.subr.mxu0 0.0
    %1072 = vmatpush2.msra.mxu0 0.0
    %1073 = vmatprep.subr.mxu0 0.0
    %1074 = vmatpush2.msra.mxu0 0.0
    %1075 = vmatprep.subr.mxu0 0.0
    %1076 = vmatpush2.msra.mxu0 0.0
    %1077 = vmatprep.subr.mxu0 0.0
    %1078 = vmatpush2.msra.mxu0 0.0
    %1079 = vmatprep.subr.mxu0 0.0
    %1080 = vmatpush2.msra.mxu0 0.0
    %1081 = vmatprep.subr.mxu0 0.0
    %1082 = vmatpush2.msra.mxu0 0.0
    %1083 = vmatprep.subr.mxu0 0.0
    %1084 = vmatpush2.msra.mxu0 0.0
    %1085 = vmatprep.subr.mxu0 0.0
    %1086 = vmatpush2.msra.mxu0 0.0
    %1087 = vmatprep.subr.mxu0 0.0
    %1088 = vmatpush2.msra.mxu0 0.0
    %1089 = vmatprep.subr.mxu0 0.0
    %1090 = vmatpush2.msra.mxu0 0.0
    %1091 = vmatprep.mubr.f32.mxu0 0.0
    %1092 = vmatmul.mubr.f32.gmra.mxu0 %v1025
    %v1093 = vpop.f32.mrf.mxu0
    %v1094 = vadd.f32 0.0, %v1093
    %v1095 = vpop.f32.mrf.mxu0
    %1096 = vdwg.mxu0
    %1097 = vrot.lane.b32.xlu0 %v169, 64
    %v1098 = vpop.permute.xlu0 %1097
    %v1101 = vsel %vm174, %v864, 0
    %1103 = vmatprep.subr.mxu0 0.0
    %1104 = vmatpush1.msra.mxu0 0.0
    %1105 = vmatprep.subr.mxu0 0.0
    %1106 = vmatpush1.msra.mxu0 0.0
    %1107 = vmatprep.subr.mxu0 0.0
    %1108 = vmatpush1.msra.mxu0 0.0
    %1109 = vmatprep.subr.mxu0 0.0
    %1110 = vmatpush1.msra.mxu0 0.0
    %1111 = vmatprep.subr.mxu0 0.0
    %1112 = vmatpush1.msra.mxu0 0.0
    %1113 = vmatprep.subr.mxu0 0.0
    %1114 = vmatpush1.msra.mxu0 0.0
    %1115 = vmatprep.subr.mxu0 0.0
    %1116 = vmatpush1.msra.mxu0 0.0
    %1117 = vmatprep.subr.mxu0 0.0
    %1118 = vmatpush1.msra.mxu0 0.0
    %1119 = vmatprep.subr.mxu0 0.0
    %1120 = vmatpush1.msra.mxu0 0.0
    %1121 = vmatprep.subr.mxu0 0.0
    %1122 = vmatpush1.msra.mxu0 0.0
    %1123 = vmatprep.subr.mxu0 0.0
    %1124 = vmatpush1.msra.mxu0 0.0
    %1125 = vmatprep.subr.mxu0 0.0
    %1126 = vmatpush1.msra.mxu0 0.0
    %1127 = vmatprep.subr.mxu0 0.0
    %1128 = vmatpush1.msra.mxu0 0.0
    %1129 = vmatprep.subr.mxu0 0.0
    %1130 = vmatpush1.msra.mxu0 0.0
    %1131 = vmatprep.subr.mxu0 0.0
    %1132 = vmatpush1.msra.mxu0 0.0
    %1133 = vmatprep.subr.mxu0 0.0
    %1134 = vmatpush1.msra.mxu0 %v1098
    %1135 = vmatprep.subr.mxu0 0.0
    %1136 = vmatpush2.msra.mxu0 0.0
    %1137 = vmatprep.subr.mxu0 0.0
    %1138 = vmatpush2.msra.mxu0 0.0
    %1139 = vmatprep.subr.mxu0 0.0
    %1140 = vmatpush2.msra.mxu0 0.0
    %1141 = vmatprep.subr.mxu0 0.0
    %1142 = vmatpush2.msra.mxu0 0.0
    %1143 = vmatprep.subr.mxu0 0.0
    %1144 = vmatpush2.msra.mxu0 0.0
    %1145 = vmatprep.subr.mxu0 0.0
    %1146 = vmatpush2.msra.mxu0 0.0
    %1147 = vmatprep.subr.mxu0 0.0
    %1148 = vmatpush2.msra.mxu0 0.0
    %1149 = vmatprep.subr.mxu0 0.0
    %1150 = vmatpush2.msra.mxu0 0.0
    %1151 = vmatprep.subr.mxu0 0.0
    %1152 = vmatpush2.msra.mxu0 0.0
    %1153 = vmatprep.subr.mxu0 0.0
    %1154 = vmatpush2.msra.mxu0 0.0
    %1155 = vmatprep.subr.mxu0 0.0
    %1156 = vmatpush2.msra.mxu0 0.0
    %1157 = vmatprep.subr.mxu0 0.0
    %1158 = vmatpush2.msra.mxu0 0.0
    %1159 = vmatprep.subr.mxu0 0.0
    %1160 = vmatpush2.msra.mxu0 0.0
    %1161 = vmatprep.subr.mxu0 0.0
    %1162 = vmatpush2.msra.mxu0 0.0
    %1163 = vmatprep.subr.mxu0 0.0
    %1164 = vmatpush2.msra.mxu0 0.0
    %1165 = vmatprep.subr.mxu0 0.0
    %1166 = vmatpush2.msra.mxu0 0.0
    %1167 = vmatprep.mubr.f32.mxu0 0.0
    %1168 = vmatmul.mubr.f32.gmra.mxu0 %v1101
    %v1169 = vpop.f32.mrf.mxu0
    %v1170 = vadd.f32 0.0, %v1169
    %v1171 = vpop.f32.mrf.mxu0
    %1172 = vdwg.mxu0
    %1173 = vrot.lane.b32.xlu0 %v155, 64
    %v1174 = vpop.permute.xlu0 %1173
    %v1177 = vsel %vm174, %v865, 0
    %1179 = vmatprep.subr.mxu0 0.0
    %1180 = vmatpush1.msra.mxu0 0.0
    %1181 = vmatprep.subr.mxu0 0.0
    %1182 = vmatpush1.msra.mxu0 0.0
    %1183 = vmatprep.subr.mxu0 0.0
    %1184 = vmatpush1.msra.mxu0 0.0
    %1185 = vmatprep.subr.mxu0 0.0
    %1186 = vmatpush1.msra.mxu0 0.0
    %1187 = vmatprep.subr.mxu0 0.0
    %1188 = vmatpush1.msra.mxu0 0.0
    %1189 = vmatprep.subr.mxu0 0.0
    %1190 = vmatpush1.msra.mxu0 0.0
    %1191 = vmatprep.subr.mxu0 0.0
    %1192 = vmatpush1.msra.mxu0 0.0
    %1193 = vmatprep.subr.mxu0 0.0
    %1194 = vmatpush1.msra.mxu0 0.0
    %1195 = vmatprep.subr.mxu0 0.0
    %1196 = vmatpush1.msra.mxu0 0.0
    %1197 = vmatprep.subr.mxu0 0.0
    %1198 = vmatpush1.msra.mxu0 0.0
    %1199 = vmatprep.subr.mxu0 0.0
    %1200 = vmatpush1.msra.mxu0 0.0
    %1201 = vmatprep.subr.mxu0 0.0
    %1202 = vmatpush1.msra.mxu0 0.0
    %1203 = vmatprep.subr.mxu0 0.0
    %1204 = vmatpush1.msra.mxu0 0.0
    %1205 = vmatprep.subr.mxu0 0.0
    %1206 = vmatpush1.msra.mxu0 0.0
    %1207 = vmatprep.subr.mxu0 0.0
    %1208 = vmatpush1.msra.mxu0 0.0
    %1209 = vmatprep.subr.mxu0 0.0
    %1210 = vmatpush1.msra.mxu0 %v1174
    %1211 = vmatprep.subr.mxu0 0.0
    %1212 = vmatpush2.msra.mxu0 0.0
    %1213 = vmatprep.subr.mxu0 0.0
    %1214 = vmatpush2.msra.mxu0 0.0
    %1215 = vmatprep.subr.mxu0 0.0
    %1216 = vmatpush2.msra.mxu0 0.0
    %1217 = vmatprep.subr.mxu0 0.0
    %1218 = vmatpush2.msra.mxu0 0.0
    %1219 = vmatprep.subr.mxu0 0.0
    %1220 = vmatpush2.msra.mxu0 0.0
    %1221 = vmatprep.subr.mxu0 0.0
    %1222 = vmatpush2.msra.mxu0 0.0
    %1223 = vmatprep.subr.mxu0 0.0
    %1224 = vmatpush2.msra.mxu0 0.0
    %1225 = vmatprep.subr.mxu0 0.0
    %1226 = vmatpush2.msra.mxu0 0.0
    %1227 = vmatprep.subr.mxu0 0.0
    %1228 = vmatpush2.msra.mxu0 0.0
    %1229 = vmatprep.subr.mxu0 0.0
    %1230 = vmatpush2.msra.mxu0 0.0
    %1231 = vmatprep.subr.mxu0 0.0
    %1232 = vmatpush2.msra.mxu0 0.0
    %1233 = vmatprep.subr.mxu0 0.0
    %1234 = vmatpush2.msra.mxu0 0.0
    %1235 = vmatprep.subr.mxu0 0.0
    %1236 = vmatpush2.msra.mxu0 0.0
    %1237 = vmatprep.subr.mxu0 0.0
    %1238 = vmatpush2.msra.mxu0 0.0
    %1239 = vmatprep.subr.mxu0 0.0
    %1240 = vmatpush2.msra.mxu0 0.0
    %1241 = vmatprep.subr.mxu0 0.0
    %1242 = vmatpush2.msra.mxu0 0.0
    %1243 = vmatprep.mubr.f32.mxu0 0.0
    %1244 = vmatmul.mubr.f32.gmra.mxu0 %v1177
    %v1245 = vpop.f32.mrf.mxu0
    %v1246 = vadd.f32 0.0, %v1245
    %v1247 = vpop.f32.mrf.mxu0
    %1248 = vdwg.mxu0
    %1249 = vrot.lane.b32.xlu0 %v163, 64
    %v1250 = vpop.permute.xlu0 %1249
    %v1253 = vsel %vm174, %v866, 0
    %1255 = vmatprep.subr.mxu0 0.0
    %1256 = vmatpush1.msra.mxu0 0.0
    %1257 = vmatprep.subr.mxu0 0.0
    %1258 = vmatpush1.msra.mxu0 0.0
    %1259 = vmatprep.subr.mxu0 0.0
    %1260 = vmatpush1.msra.mxu0 0.0
    %1261 = vmatprep.subr.mxu0 0.0
    %1262 = vmatpush1.msra.mxu0 0.0
    %1263 = vmatprep.subr.mxu0 0.0
    %1264 = vmatpush1.msra.mxu0 0.0
    %1265 = vmatprep.subr.mxu0 0.0
    %1266 = vmatpush1.msra.mxu0 0.0
    %1267 = vmatprep.subr.mxu0 0.0
    %1268 = vmatpush1.msra.mxu0 0.0
    %1269 = vmatprep.subr.mxu0 0.0
    %1270 = vmatpush1.msra.mxu0 0.0
    %1271 = vmatprep.subr.mxu0 0.0
    %1272 = vmatpush1.msra.mxu0 0.0
    %1273 = vmatprep.subr.mxu0 0.0
    %1274 = vmatpush1.msra.mxu0 0.0
    %1275 = vmatprep.subr.mxu0 0.0
    %1276 = vmatpush1.msra.mxu0 0.0
    %1277 = vmatprep.subr.mxu0 0.0
    %1278 = vmatpush1.msra.mxu0 0.0
    %1279 = vmatprep.subr.mxu0 0.0
    %1280 = vmatpush1.msra.mxu0 0.0
    %1281 = vmatprep.subr.mxu0 0.0
    %1282 = vmatpush1.msra.mxu0 0.0
    %1283 = vmatprep.subr.mxu0 0.0
    %1284 = vmatpush1.msra.mxu0 0.0
    %1285 = vmatprep.subr.mxu0 0.0
    %1286 = vmatpush1.msra.mxu0 %v1250
    %1287 = vmatprep.subr.mxu0 0.0
    %1288 = vmatpush2.msra.mxu0 0.0
    %1289 = vmatprep.subr.mxu0 0.0
    %1290 = vmatpush2.msra.mxu0 0.0
    %1291 = vmatprep.subr.mxu0 0.0
    %1292 = vmatpush2.msra.mxu0 0.0
    %1293 = vmatprep.subr.mxu0 0.0
    %1294 = vmatpush2.msra.mxu0 0.0
    %1295 = vmatprep.subr.mxu0 0.0
    %1296 = vmatpush2.msra.mxu0 0.0
    %1297 = vmatprep.subr.mxu0 0.0
    %1298 = vmatpush2.msra.mxu0 0.0
    %1299 = vmatprep.subr.mxu0 0.0
    %1300 = vmatpush2.msra.mxu0 0.0
    %1301 = vmatprep.subr.mxu0 0.0
    %1302 = vmatpush2.msra.mxu0 0.0
    %1303 = vmatprep.subr.mxu0 0.0
    %1304 = vmatpush2.msra.mxu0 0.0
    %1305 = vmatprep.subr.mxu0 0.0
    %1306 = vmatpush2.msra.mxu0 0.0
    %1307 = vmatprep.subr.mxu0 0.0
    %1308 = vmatpush2.msra.mxu0 0.0
    %1309 = vmatprep.subr.mxu0 0.0
    %1310 = vmatpush2.msra.mxu0 0.0
    %1311 = vmatprep.subr.mxu0 0.0
    %1312 = vmatpush2.msra.mxu0 0.0
    %1313 = vmatprep.subr.mxu0 0.0
    %1314 = vmatpush2.msra.mxu0 0.0
    %1315 = vmatprep.subr.mxu0 0.0
    %1316 = vmatpush2.msra.mxu0 0.0
    %1317 = vmatprep.subr.mxu0 0.0
    %1318 = vmatpush2.msra.mxu0 0.0
    %1319 = vmatprep.mubr.f32.mxu0 0.0
    %1320 = vmatmul.mubr.f32.gmra.mxu0 %v1253
    %v1321 = vpop.f32.mrf.mxu0
    %v1322 = vadd.f32 0.0, %v1321
    %v1323 = vpop.f32.mrf.mxu0
    %1324 = vdwg.mxu0
    %1325 = vrot.lane.b32.xlu0 %v167, 64
    %v1326 = vpop.permute.xlu0 %1325
    %v1329 = vsel %vm174, %v867, 0
    %1331 = vmatprep.subr.mxu0 0.0
    %1332 = vmatpush1.msra.mxu0 0.0
    %1333 = vmatprep.subr.mxu0 0.0
    %1334 = vmatpush1.msra.mxu0 0.0
    %1335 = vmatprep.subr.mxu0 0.0
    %1336 = vmatpush1.msra.mxu0 0.0
    %1337 = vmatprep.subr.mxu0 0.0
    %1338 = vmatpush1.msra.mxu0 0.0
    %1339 = vmatprep.subr.mxu0 0.0
    %1340 = vmatpush1.msra.mxu0 0.0
    %1341 = vmatprep.subr.mxu0 0.0
    %1342 = vmatpush1.msra.mxu0 0.0
    %1343 = vmatprep.subr.mxu0 0.0
    %1344 = vmatpush1.msra.mxu0 0.0
    %1345 = vmatprep.subr.mxu0 0.0
    %1346 = vmatpush1.msra.mxu0 0.0
    %1347 = vmatprep.subr.mxu0 0.0
    %1348 = vmatpush1.msra.mxu0 0.0
    %1349 = vmatprep.subr.mxu0 0.0
    %1350 = vmatpush1.msra.mxu0 0.0
    %1351 = vmatprep.subr.mxu0 0.0
    %1352 = vmatpush1.msra.mxu0 0.0
    %1353 = vmatprep.subr.mxu0 0.0
    %1354 = vmatpush1.msra.mxu0 0.0
    %1355 = vmatprep.subr.mxu0 0.0
    %1356 = vmatpush1.msra.mxu0 0.0
    %1357 = vmatprep.subr.mxu0 0.0
    %1358 = vmatpush1.msra.mxu0 0.0
    %1359 = vmatprep.subr.mxu0 0.0
    %1360 = vmatpush1.msra.mxu0 0.0
    %1361 = vmatprep.subr.mxu0 0.0
    %1362 = vmatpush1.msra.mxu0 %v1326
    %1363 = vmatprep.subr.mxu0 0.0
    %1364 = vmatpush2.msra.mxu0 0.0
    %1365 = vmatprep.subr.mxu0 0.0
    %1366 = vmatpush2.msra.mxu0 0.0
    %1367 = vmatprep.subr.mxu0 0.0
    %1368 = vmatpush2.msra.mxu0 0.0
    %1369 = vmatprep.subr.mxu0 0.0
    %1370 = vmatpush2.msra.mxu0 0.0
    %1371 = vmatprep.subr.mxu0 0.0
    %1372 = vmatpush2.msra.mxu0 0.0
    %1373 = vmatprep.subr.mxu0 0.0
    %1374 = vmatpush2.msra.mxu0 0.0
    %1375 = vmatprep.subr.mxu0 0.0
    %1376 = vmatpush2.msra.mxu0 0.0
    %1377 = vmatprep.subr.mxu0 0.0
    %1378 = vmatpush2.msra.mxu0 0.0
    %1379 = vmatprep.subr.mxu0 0.0
    %1380 = vmatpush2.msra.mxu0 0.0
    %1381 = vmatprep.subr.mxu0 0.0
    %1382 = vmatpush2.msra.mxu0 0.0
    %1383 = vmatprep.subr.mxu0 0.0
    %1384 = vmatpush2.msra.mxu0 0.0
    %1385 = vmatprep.subr.mxu0 0.0
    %1386 = vmatpush2.msra.mxu0 0.0
    %1387 = vmatprep.subr.mxu0 0.0
    %1388 = vmatpush2.msra.mxu0 0.0
    %1389 = vmatprep.subr.mxu0 0.0
    %1390 = vmatpush2.msra.mxu0 0.0
    %1391 = vmatprep.subr.mxu0 0.0
    %1392 = vmatpush2.msra.mxu0 0.0
    %1393 = vmatprep.subr.mxu0 0.0
    %1394 = vmatpush2.msra.mxu0 0.0
    %1395 = vmatprep.mubr.f32.mxu0 0.0
    %1396 = vmatmul.mubr.f32.gmra.mxu0 %v1329
    %v1397 = vpop.f32.mrf.mxu0
    %v1398 = vadd.f32 0.0, %v1397
    %v1399 = vpop.f32.mrf.mxu0
    %1400 = vdwg.mxu0
    %1401 = vrot.lane.b32.xlu0 %v171, 64
    %v1402 = vpop.permute.xlu0 %1401
    %v1405 = vsel %vm174, %v868, 0
    %1407 = vmatprep.subr.mxu0 0.0
    %1408 = vmatpush1.msra.mxu0 0.0
    %1409 = vmatprep.subr.mxu0 0.0
    %1410 = vmatpush1.msra.mxu0 0.0
    %1411 = vmatprep.subr.mxu0 0.0
    %1412 = vmatpush1.msra.mxu0 0.0
    %1413 = vmatprep.subr.mxu0 0.0
    %1414 = vmatpush1.msra.mxu0 0.0
    %1415 = vmatprep.subr.mxu0 0.0
    %1416 = vmatpush1.msra.mxu0 0.0
    %1417 = vmatprep.subr.mxu0 0.0
    %1418 = vmatpush1.msra.mxu0 0.0
    %1419 = vmatprep.subr.mxu0 0.0
    %1420 = vmatpush1.msra.mxu0 0.0
    %1421 = vmatprep.subr.mxu0 0.0
    %1422 = vmatpush1.msra.mxu0 0.0
    %1423 = vmatprep.subr.mxu0 0.0
    %1424 = vmatpush1.msra.mxu0 0.0
    %1425 = vmatprep.subr.mxu0 0.0
    %1426 = vmatpush1.msra.mxu0 0.0
    %1427 = vmatprep.subr.mxu0 0.0
    %1428 = vmatpush1.msra.mxu0 0.0
    %1429 = vmatprep.subr.mxu0 0.0
    %1430 = vmatpush1.msra.mxu0 0.0
    %1431 = vmatprep.subr.mxu0 0.0
    %1432 = vmatpush1.msra.mxu0 0.0
    %1433 = vmatprep.subr.mxu0 0.0
    %1434 = vmatpush1.msra.mxu0 0.0
    %1435 = vmatprep.subr.mxu0 0.0
    %1436 = vmatpush1.msra.mxu0 0.0
    %1437 = vmatprep.subr.mxu0 0.0
    %1438 = vmatpush1.msra.mxu0 %v1402
    %1439 = vmatprep.subr.mxu0 0.0
    %1440 = vmatpush2.msra.mxu0 0.0
    %1441 = vmatprep.subr.mxu0 0.0
    %1442 = vmatpush2.msra.mxu0 0.0
    %1443 = vmatprep.subr.mxu0 0.0
    %1444 = vmatpush2.msra.mxu0 0.0
    %1445 = vmatprep.subr.mxu0 0.0
    %1446 = vmatpush2.msra.mxu0 0.0
    %1447 = vmatprep.subr.mxu0 0.0
    %1448 = vmatpush2.msra.mxu0 0.0
    %1449 = vmatprep.subr.mxu0 0.0
    %1450 = vmatpush2.msra.mxu0 0.0
    %1451 = vmatprep.subr.mxu0 0.0
    %1452 = vmatpush2.msra.mxu0 0.0
    %1453 = vmatprep.subr.mxu0 0.0
    %1454 = vmatpush2.msra.mxu0 0.0
    %1455 = vmatprep.subr.mxu0 0.0
    %1456 = vmatpush2.msra.mxu0 0.0
    %1457 = vmatprep.subr.mxu0 0.0
    %1458 = vmatpush2.msra.mxu0 0.0
    %1459 = vmatprep.subr.mxu0 0.0
    %1460 = vmatpush2.msra.mxu0 0.0
    %1461 = vmatprep.subr.mxu0 0.0
    %1462 = vmatpush2.msra.mxu0 0.0
    %1463 = vmatprep.subr.mxu0 0.0
    %1464 = vmatpush2.msra.mxu0 0.0
    %1465 = vmatprep.subr.mxu0 0.0
    %1466 = vmatpush2.msra.mxu0 0.0
    %1467 = vmatprep.subr.mxu0 0.0
    %1468 = vmatpush2.msra.mxu0 0.0
    %1469 = vmatprep.subr.mxu0 0.0
    %1470 = vmatpush2.msra.mxu0 0.0
    %1471 = vmatprep.mubr.f32.mxu0 0.0
    %1472 = vmatmul.mubr.f32.gmra.mxu0 %v1405
    %v1473 = vpop.f32.mrf.mxu0
    %v1474 = vadd.f32 0.0, %v1473
    %v1475 = vpop.f32.mrf.mxu0
    %1476 = vdwg.mxu0
    %1479 = vrot.lane.b32.xlu0 %v1018, 8
    %v1480 = vpop.permute.xlu0 %1479
    %1481 = vrot.lane.b32.xlu0 %v1322, 8
    %v1482 = vpop.permute.xlu0 %1481
    %1487 = vrot.lane.b32.xlu0 %v1094, 16
    %v1488 = vpop.permute.xlu0 %1487
    %1489 = vrot.lane.b32.xlu0 %v1398, 16
    %v1490 = vpop.permute.xlu0 %1489
    %1495 = vrot.lane.b32.xlu0 %v1170, 24
    %v1496 = vpop.permute.xlu0 %1495
    %1497 = vrot.lane.b32.xlu0 %v1474, 24
    %v1498 = vpop.permute.xlu0 %1497
    %v1501 = vsel %vm174, %v942, %v1480
    %v1502 = vsel %vm174, %v1246, %v1482
    %vm1503 = vcmask 130048
    %v1504 = vsel %vm1503, %v1501, %v1488
    %v1505 = vsel %vm1503, %v1502, %v1490
    %vm1506 = vcmask 195584
    %v1507 = vsel %vm1506, %v1504, %v1496
    %v1508 = vsel %vm1506, %v1505, %v1498
    %v1509 = vld [vmem:[%s2] sm:$0xff]
    %v1510 = vld [vmem:[%s2 + $0x8] sm:$0xff]
    %v1511 = vld [vmem:[%s2 + $0x10] sm:$0xff]
    %v1512 = vld [vmem:[%s2 + $0x18] sm:$0xff]
    %v1513 = vlaneseq
    %v1514 = vshrl.u32 %v1513, 7
    %v1515 = vsub.s32 0, %v1514
    %v1516 = vrot.slane %v28, %v1515
    %v1518 = vsel %vm33, %v1507, 0
    %v1521 = vsel %vm33, %v1508, 0
    %1523 = vmatprep.subr.mxu0 0.0
    %1524 = vmatpush1.msra.mxu0 0.0
    %1525 = vmatprep.subr.mxu0 0.0
    %1526 = vmatpush1.msra.mxu0 0.0
    %1527 = vmatprep.subr.mxu0 0.0
    %1528 = vmatpush1.msra.mxu0 0.0
    %1529 = vmatprep.subr.mxu0 0.0
    %1530 = vmatpush1.msra.mxu0 0.0
    %1531 = vmatprep.subr.mxu0 0.0
    %1532 = vmatpush1.msra.mxu0 0.0
    %1533 = vmatprep.subr.mxu0 0.0
    %1534 = vmatpush1.msra.mxu0 0.0
    %1535 = vmatprep.subr.mxu0 0.0
    %1536 = vmatpush1.msra.mxu0 0.0
    %1537 = vmatprep.subr.mxu0 0.0
    %1538 = vmatpush1.msra.mxu0 0.0
    %1539 = vmatprep.subr.mxu0 0.0
    %1540 = vmatpush1.msra.mxu0 0.0
    %1541 = vmatprep.subr.mxu0 0.0
    %1542 = vmatpush1.msra.mxu0 0.0
    %1543 = vmatprep.subr.mxu0 0.0
    %1544 = vmatpush1.msra.mxu0 0.0
    %1545 = vmatprep.subr.mxu0 0.0
    %1546 = vmatpush1.msra.mxu0 0.0
    %1547 = vmatprep.subr.mxu0 0.0
    %1548 = vmatpush1.msra.mxu0 %v1512
    %1549 = vmatprep.subr.mxu0 0.0
    %1550 = vmatpush1.msra.mxu0 %v1511
    %1551 = vmatprep.subr.mxu0 0.0
    %1552 = vmatpush1.msra.mxu0 %v1510
    %1553 = vmatprep.subr.mxu0 0.0
    %1554 = vmatpush1.msra.mxu0 %v1509
    %1555 = vmatprep.subr.mxu0 0.0
    %1556 = vmatpush2.msra.mxu0 0.0
    %1557 = vmatprep.subr.mxu0 0.0
    %1558 = vmatpush2.msra.mxu0 0.0
    %1559 = vmatprep.subr.mxu0 0.0
    %1560 = vmatpush2.msra.mxu0 0.0
    %1561 = vmatprep.subr.mxu0 0.0
    %1562 = vmatpush2.msra.mxu0 0.0
    %1563 = vmatprep.subr.mxu0 0.0
    %1564 = vmatpush2.msra.mxu0 0.0
    %1565 = vmatprep.subr.mxu0 0.0
    %1566 = vmatpush2.msra.mxu0 0.0
    %1567 = vmatprep.subr.mxu0 0.0
    %1568 = vmatpush2.msra.mxu0 0.0
    %1569 = vmatprep.subr.mxu0 0.0
    %1570 = vmatpush2.msra.mxu0 0.0
    %1571 = vmatprep.subr.mxu0 0.0
    %1572 = vmatpush2.msra.mxu0 0.0
    %1573 = vmatprep.subr.mxu0 0.0
    %1574 = vmatpush2.msra.mxu0 0.0
    %1575 = vmatprep.subr.mxu0 0.0
    %1576 = vmatpush2.msra.mxu0 0.0
    %1577 = vmatprep.subr.mxu0 0.0
    %1578 = vmatpush2.msra.mxu0 0.0
    %1579 = vmatprep.subr.mxu0 0.0
    %1580 = vmatpush2.msra.mxu0 0.0
    %1581 = vmatprep.subr.mxu0 0.0
    %1582 = vmatpush2.msra.mxu0 0.0
    %1583 = vmatprep.subr.mxu0 0.0
    %1584 = vmatpush2.msra.mxu0 0.0
    %1585 = vmatprep.subr.mxu0 0.0
    %1586 = vmatpush2.msra.mxu0 0.0
    %1587 = vmatprep.mubr.f32.mxu0 0.0
    %1588 = vmatmul.mubr.f32.gmra.mxu0 %v1518
    %v1589 = vpop.f32.mrf.mxu0
    %v1590 = vadd.f32 %v1516, %v1589
    %v1591 = vpop.f32.mrf.mxu0
    %1592 = vmatprep.mubr.f32.mxu0 0.0
    %1593 = vmatmul.mubr.f32.gmra.mxu0 %v1521
    %v1594 = vpop.f32.mrf.mxu0
    %v1595 = vadd.f32 %v1516, %v1594
    %v1596 = vpop.f32.mrf.mxu0
    %1597 = vdwg.mxu0
    %v1598 = vadd.f32 %v1590, %v24
    %v1599 = vadd.f32 %v1595, %v25
    %v1600 = vsel %vm33, %v1598, 0.0
    %1601 = vadd.xlane.f32.xlu0 %v1600
    %v1602 = vpop.xlane.xlu0 %1601
    %v1603 = vsel %vm33, %v1599, 0.0
    %1604 = vadd.xlane.f32.xlu0 %v1603
    %v1605 = vpop.xlane.xlu0 %1604
    %v1606 = vmul.f32 %v1602, %v40
    %v1607 = vmul.f32 %v1605, %v40
    %v1608 = vsub.f32 %v1598, %v1606
    %v1609 = vsub.f32 %v1599, %v1607
    %v1610 = vmul.f32 %v1608, %v1608
    %v1611 = vmul.f32 %v1609, %v1609
    %v1612 = vsel %vm33, %v1610, 0.0
    %1613 = vadd.xlane.f32.xlu0 %v1612
    %v1614 = vpop.xlane.xlu0 %1613
    %v1615 = vsel %vm33, %v1611, 0.0
    %1616 = vadd.xlane.f32.xlu0 %v1615
    %v1617 = vpop.xlane.xlu0 %1616
    %v1618 = vmul.f32 %v1614, %v40
    %v1619 = vmul.f32 %v1617, %v40
    %v1620 = vadd.f32 %v1618, 1e-05
    %v1621 = vadd.f32 %v1619, 1e-05
    %v1622 = vrsqrt.pop %v1620
    %v1623 = vrsqrt.pop %v1621
    %v1624 = vmul.f32 %v1608, %v1622
    %v1625 = vmul.f32 %v1609, %v1623
    %v1626 = vlaneseq
    %v1627 = vshrl.u32 %v1626, 7
    %v1628 = vsub.s32 0, %v1627
    %v1629 = vrot.slane %v29, %v1628
    %v1630 = vmul.f32 %v1624, %v1629
    %v1631 = vmul.f32 %v1625, %v1629
    %v1632 = vlaneseq
    %v1633 = vshrl.u32 %v1632, 7
    %v1634 = vsub.s32 0, %v1633
    %v1635 = vrot.slane %v30, %v1634
    %v1636 = vadd.f32 %v1630, %v1635
    %v1637 = vadd.f32 %v1631, %v1635
    %v1638 = vld [vmem:[%s3] sm:$0xff]
    %v1639 = vld [vmem:[%s3 + $0x8] sm:$0xff]
    %v1640 = vld [vmem:[%s3 + $0x10] sm:$0xff]
    %v1641 = vld [vmem:[%s3 + $0x18] sm:$0xff]
    %v1642 = vlaneseq
    %v1643 = vshrl.u32 %v1642, 7
    %v1644 = vsub.s32 0, %v1643
    %v1645 = vrot.slane %v31, %v1644
    %v1647 = vsel %vm33, %v1636, 0
    %v1650 = vsel %vm33, %v1637, 0
    %1652 = vmatprep.subr.mxu0 0.0
    %1653 = vmatpush1.msra.mxu0 0.0
    %1654 = vmatprep.subr.mxu0 0.0
    %1655 = vmatpush1.msra.mxu0 0.0
    %1656 = vmatprep.subr.mxu0 0.0
    %1657 = vmatpush1.msra.mxu0 0.0
    %1658 = vmatprep.subr.mxu0 0.0
    %1659 = vmatpush1.msra.mxu0 0.0
    %1660 = vmatprep.subr.mxu0 0.0
    %1661 = vmatpush1.msra.mxu0 0.0
    %1662 = vmatprep.subr.mxu0 0.0
    %1663 = vmatpush1.msra.mxu0 0.0
    %1664 = vmatprep.subr.mxu0 0.0
    %1665 = vmatpush1.msra.mxu0 0.0
    %1666 = vmatprep.subr.mxu0 0.0
    %1667 = vmatpush1.msra.mxu0 0.0
    %1668 = vmatprep.subr.mxu0 0.0
    %1669 = vmatpush1.msra.mxu0 0.0
    %1670 = vmatprep.subr.mxu0 0.0
    %1671 = vmatpush1.msra.mxu0 0.0
    %1672 = vmatprep.subr.mxu0 0.0
    %1673 = vmatpush1.msra.mxu0 0.0
    %1674 = vmatprep.subr.mxu0 0.0
    %1675 = vmatpush1.msra.mxu0 0.0
    %1676 = vmatprep.subr.mxu0 0.0
    %1677 = vmatpush1.msra.mxu0 %v1641
    %1678 = vmatprep.subr.mxu0 0.0
    %1679 = vmatpush1.msra.mxu0 %v1640
    %1680 = vmatprep.subr.mxu0 0.0
    %1681 = vmatpush1.msra.mxu0 %v1639
    %1682 = vmatprep.subr.mxu0 0.0
    %1683 = vmatpush1.msra.mxu0 %v1638
    %1684 = vmatprep.subr.mxu0 0.0
    %1685 = vmatpush2.msra.mxu0 0.0
    %1686 = vmatprep.subr.mxu0 0.0
    %1687 = vmatpush2.msra.mxu0 0.0
    %1688 = vmatprep.subr.mxu0 0.0
    %1689 = vmatpush2.msra.mxu0 0.0
    %1690 = vmatprep.subr.mxu0 0.0
    %1691 = vmatpush2.msra.mxu0 0.0
    %1692 = vmatprep.subr.mxu0 0.0
    %1693 = vmatpush2.msra.mxu0 0.0
    %1694 = vmatprep.subr.mxu0 0.0
    %1695 = vmatpush2.msra.mxu0 0.0
    %1696 = vmatprep.subr.mxu0 0.0
    %1697 = vmatpush2.msra.mxu0 0.0
    %1698 = vmatprep.subr.mxu0 0.0
    %1699 = vmatpush2.msra.mxu0 0.0
    %1700 = vmatprep.subr.mxu0 0.0
    %1701 = vmatpush2.msra.mxu0 0.0
    %1702 = vmatprep.subr.mxu0 0.0
    %1703 = vmatpush2.msra.mxu0 0.0
    %1704 = vmatprep.subr.mxu0 0.0
    %1705 = vmatpush2.msra.mxu0 0.0
    %1706 = vmatprep.subr.mxu0 0.0
    %1707 = vmatpush2.msra.mxu0 0.0
    %1708 = vmatprep.subr.mxu0 0.0
    %1709 = vmatpush2.msra.mxu0 0.0
    %1710 = vmatprep.subr.mxu0 0.0
    %1711 = vmatpush2.msra.mxu0 0.0
    %1712 = vmatprep.subr.mxu0 0.0
    %1713 = vmatpush2.msra.mxu0 0.0
    %1714 = vmatprep.subr.mxu0 0.0
    %1715 = vmatpush2.msra.mxu0 0.0
    %1716 = vmatprep.mubr.f32.mxu0 0.0
    %1717 = vmatmul.mubr.f32.gmra.mxu0 %v1647
    %v1718 = vpop.f32.mrf.mxu0
    %v1719 = vadd.f32 %v1645, %v1718
    %v1720 = vpop.f32.mrf.mxu0
    %1721 = vmatprep.mubr.f32.mxu0 0.0
    %1722 = vmatmul.mubr.f32.gmra.mxu0 %v1650
    %v1723 = vpop.f32.mrf.mxu0
    %v1724 = vadd.f32 %v1645, %v1723
    %v1725 = vpop.f32.mrf.mxu0
    %1726 = vdwg.mxu0
    %v1727 = vmul.f32 %v1719, 0.5
    %v1728 = vmul.f32 %v1724, 0.5
    %v1729 = vmul.f32 %v1719, 0.044715
    %v1730 = vmul.f32 %v1724, 0.044715
    %v1731 = vmul.f32 %v1729, %v1719
    %v1732 = vmul.f32 %v1730, %v1724
    %v1733 = vmul.f32 %v1731, %v1719
    %v1734 = vmul.f32 %v1732, %v1724
    %v1735 = vadd.f32 %v1719, %v1733
    %v1736 = vadd.f32 %v1724, %v1734
    %v1737 = vmul.f32 %v1735, 0.7978846
    %v1738 = vmul.f32 %v1736, 0.7978846
    %v1739 = vtanh.pop %v1737
    %v1740 = vtanh.pop %v1738
    %v1741 = vadd.f32 %v1739, 1.0
    %v1742 = vadd.f32 %v1740, 1.0
    %v1743 = vmul.f32 %v1727, %v1741
    %v1744 = vmul.f32 %v1728, %v1742
    %v1745 = vld [vmem:[%s4] sm:$0xff]
    %v1746 = vld [vmem:[%s4 + $0x8] sm:$0xff]
    %v1747 = vld [vmem:[%s4 + $0x10] sm:$0xff]
    %v1748 = vld [vmem:[%s4 + $0x18] sm:$0xff]
    %v1749 = vld [vmem:[%s4 + $0x20] sm:$0xff]
    %v1750 = vld [vmem:[%s4 + $0x28] sm:$0xff]
    %v1751 = vld [vmem:[%s4 + $0x30] sm:$0xff]
    %v1752 = vld [vmem:[%s4 + $0x38] sm:$0xff]
    %v1753 = vld [vmem:[%s4 + $0x40] sm:$0xff]
    %v1754 = vld [vmem:[%s4 + $0x48] sm:$0xff]
    %v1755 = vld [vmem:[%s4 + $0x50] sm:$0xff]
    %v1756 = vld [vmem:[%s4 + $0x58] sm:$0xff]
    %v1757 = vld [vmem:[%s4 + $0x60] sm:$0xff]
    %v1758 = vld [vmem:[%s4 + $0x68] sm:$0xff]
    %v1759 = vld [vmem:[%s4 + $0x70] sm:$0xff]
    %v1760 = vld [vmem:[%s4 + $0x78] sm:$0xff]
    %v1761 = vlaneseq
    %v1762 = vshrl.u32 %v1761, 7
    %v1763 = vsub.s32 0, %v1762
    %v1764 = vrot.slane %v32, %v1763
    %1765 = vmatprep.subr.mxu0 0.0
    %1766 = vmatpush1.msra.mxu0 %v1760
    %1767 = vmatprep.subr.mxu0 0.0
    %1768 = vmatpush1.msra.mxu0 %v1759
    %1769 = vmatprep.subr.mxu0 0.0
    %1770 = vmatpush1.msra.mxu0 %v1758
    %1771 = vmatprep.subr.mxu0 0.0
    %1772 = vmatpush1.msra.mxu0 %v1757
    %1773 = vmatprep.subr.mxu0 0.0
    %1774 = vmatpush1.msra.mxu0 %v1756
    %1775 = vmatprep.subr.mxu0 0.0
    %1776 = vmatpush1.msra.mxu0 %v1755
    %1777 = vmatprep.subr.mxu0 0.0
    %1778 = vmatpush1.msra.mxu0 %v1754
    %1779 = vmatprep.subr.mxu0 0.0
    %1780 = vmatpush1.msra.mxu0 %v1753
    %1781 = vmatprep.subr.mxu0 0.0
    %1782 = vmatpush1.msra.mxu0 %v1752
    %1783 = vmatprep.subr.mxu0 0.0
    %1784 = vmatpush1.msra.mxu0 %v1751
    %1785 = vmatprep.subr.mxu0 0.0
    %1786 = vmatpush1.msra.mxu0 %v1750
    %1787 = vmatprep.subr.mxu0 0.0
    %1788 = vmatpush1.msra.mxu0 %v1749
    %1789 = vmatprep.subr.mxu0 0.0
    %1790 = vmatpush1.msra.mxu0 %v1748
    %1791 = vmatprep.subr.mxu0 0.0
    %1792 = vmatpush1.msra.mxu0 %v1747
    %1793 = vmatprep.subr.mxu0 0.0
    %1794 = vmatpush1.msra.mxu0 %v1746
    %1795 = vmatprep.subr.mxu0 0.0
    %1796 = vmatpush1.msra.mxu0 %v1745
    %1797 = vmatprep.subr.mxu0 0.0
    %1798 = vmatpush2.msra.mxu0 0.0
    %1799 = vmatprep.subr.mxu0 0.0
    %1800 = vmatpush2.msra.mxu0 0.0
    %1801 = vmatprep.subr.mxu0 0.0
    %1802 = vmatpush2.msra.mxu0 0.0
    %1803 = vmatprep.subr.mxu0 0.0
    %1804 = vmatpush2.msra.mxu0 0.0
    %1805 = vmatprep.subr.mxu0 0.0
    %1806 = vmatpush2.msra.mxu0 0.0
    %1807 = vmatprep.subr.mxu0 0.0
    %1808 = vmatpush2.msra.mxu0 0.0
    %1809 = vmatprep.subr.mxu0 0.0
    %1810 = vmatpush2.msra.mxu0 0.0
    %1811 = vmatprep.subr.mxu0 0.0
    %1812 = vmatpush2.msra.mxu0 0.0
    %1813 = vmatprep.subr.mxu0 0.0
    %1814 = vmatpush2.msra.mxu0 0.0
    %1815 = vmatprep.subr.mxu0 0.0
    %1816 = vmatpush2.msra.mxu0 0.0
    %1817 = vmatprep.subr.mxu0 0.0
    %1818 = vmatpush2.msra.mxu0 0.0
    %1819 = vmatprep.subr.mxu0 0.0
    %1820 = vmatpush2.msra.mxu0 0.0
    %1821 = vmatprep.subr.mxu0 0.0
    %1822 = vmatpush2.msra.mxu0 0.0
    %1823 = vmatprep.subr.mxu0 0.0
    %1824 = vmatpush2.msra.mxu0 0.0
    %1825 = vmatprep.subr.mxu0 0.0
    %1826 = vmatpush2.msra.mxu0 0.0
    %1827 = vmatprep.subr.mxu0 0.0
    %1828 = vmatpush2.msra.mxu0 0.0
    %1829 = vmatprep.mubr.f32.mxu0 0.0
    %1830 = vmatmul.mubr.f32.gmra.mxu0 %v1743
    %v1831 = vpop.f32.mrf.mxu0
    %v1832 = vadd.f32 %v1764, %v1831
    %v1833 = vpop.f32.mrf.mxu0
    %1834 = vmatprep.mubr.f32.mxu0 0.0
    %1835 = vmatmul.mubr.f32.gmra.mxu0 %v1744
    %v1836 = vpop.f32.mrf.mxu0
    %v1837 = vadd.f32 %v1764, %v1836
    %v1838 = vpop.f32.mrf.mxu0
    %1839 = vdwg.mxu0
    %v1840 = vadd.f32 %v1832, %v1598
    %v1841 = vadd.f32 %v1837, %v1599
    %1842 = vst.msk [vmem:[#allocation2] sm:$0xff] %vm33, %v1840
    %1843 = vst.msk [vmem:[#allocation2 + $0x8] sm:$0xff] %vm33, %v1841
    // Predicated region
    $region26: #{tpu_custom_call.1} parent=1 // pred_check
      _
    $region27: #{tpu_custom_call.1} parent=1 // pred_check_branch
      %1845 = sbr.rel (0) target = $region29
    $region28: #{tpu_custom_call.1} parent=1 // pred_region
      %s1847 = ssub.s32 256, 256
      %1848 = vsyncadd [#allocation3], %s1847
      %s1849 = sshll.u32 [#allocation2], 4
      %s1850 = int_to_ptr.vmem [resolvable:$true] %s1849
      %1855 = dma.vmem_to_hbm [thread:$0]  %s1850, 256, %s6, [#allocation3], 128, 128, 8
    $region29: #{tpu_custom_call.1} parent=1 // pred_fallthru
      _
    // Predicated region
    $region30: #{tpu_custom_call.1} parent=1 // pred_check
      _
    $region31: #{tpu_custom_call.1} parent=1 // pred_check_branch
      %1857 = sbr.rel (0) target = $region33
    $region32: #{tpu_custom_call.1} parent=1 // pred_region
      %1858 = dma.done [#allocation3], 256
    $region33: #{tpu_custom_call.1} parent=1 // pred_fallthru
      _
    %1859 = vsyncpa [#allocation3], 1

</llo_original>
